<compile_context>
chip_gen: v7x
topology: tpu7x:2x2x1
jax: 0.10.0
libtpu: 0.0.40
codegen_flags: <defaults>
</compile_context>

<pallas_src>
import functools

import numpy as np
import jax
import jax.numpy as jnp
from jax import lax
from jax.experimental import pallas as pl
from jax.experimental.pallas import tpu as pltpu

_LEAKY_SLOPE = 0.01
_F32_MAX = float(np.finfo(np.float32).max)

# Flat per-layer parameter order used both by the wrapper and the kernel.
_LAYER_KEYS = ("w_node", "w_edge", "pn_src", "pn_nbr", "pe_src", "pe_nbr")


# ----------------------------- shared math (used by kernel AND pure-JAX reference) -------------------
def _leaky(x):
    return jnp.where(x >= 0, x, _LEAKY_SLOPE * x)


def _nan_to_num(x):
    x = jnp.where(jnp.isnan(x), jnp.float32(0.0), x)
    x = jnp.where(x == jnp.inf, jnp.float32(_F32_MAX), x)
    x = jnp.where(x == -jnp.inf, jnp.float32(-_F32_MAX), x)
    return x


def _dot(a, b):
    # bf16 operands, f32 accumulation: one MXU pass (instead of the multi-pass f32 emulation
    # forced by precision=HIGHEST).  Shared by the kernel and the pure-JAX reference so both
    # paths see identical rounding.
    return jnp.dot(a.astype(jnp.bfloat16), b.astype(jnp.bfloat16),
                   preferred_element_type=jnp.float32)


def _project(feats, w):
    """concat(feats, axis=1) @ w without materialising the concat.

    `feats` is a single [R, K] array or a tuple of arrays whose column-concatenation is the
    logical input; weight rows are split accordingly: concat([A, B]) @ W == A@W[:ka] + B@W[ka:].
    """
    if not isinstance(feats, (tuple, list)):
        feats = (feats,)
    acc = None
    off = 0
    for part in feats:
        k = part.shape[1]
        term = _dot(part, w[off:off + k, :])
        acc = term if acc is None else acc + term
        off += k
    return acc


def _attn_agg(src, nbr, p_src, p_nbr, adj, inner_nan_to_num):
    """NENN attention aggregation (faithful to the torch tile/concat/matmul formulation).

    src:   [R, Ds]  row-entity embeddings ("query" half of the concat)
    nbr:   [C, Dn]  neighbor embeddings (aggregated)
    p_src: [1, Ds]  first half of the attention parameter vector
    p_nbr: [1, Dn]  second half of the attention parameter vector
    adj:   [R, C]   adjacency mask (rows -> neighbors)
    returns [R, Dn]
    """
    # score[r, c] = leaky(src[r].p_src + nbr[c].p_nbr)
    # 'a' is a cheap f32 VPU multiply + lane-reduce (keeps the MXU free);
    # 'b' is a tiny dot that directly yields the [1, C] layout (no extra transpose/relayout).
    a = jnp.sum(src * p_src, axis=1, keepdims=True)                      # [R, 1]
    b = lax.dot_general(p_nbr.astype(jnp.bfloat16), nbr.astype(jnp.bfloat16),
                        (((1,), (1,)), ((), ())),
                        preferred_element_type=jnp.float32)              # [1, C]
    score = _leaky(a + b)                                                # [R, C]
    e = jnp.exp(score)
    denom = jnp.sum(e * adj, axis=1, keepdims=True)                      # [R, 1]
    imp = e / denom * adj                                                # [R, C]
    if inner_nan_to_num:
        imp = _nan_to_num(imp)
    agg = _dot(imp, nbr)                                                 # [R, Dn]  (MXU)
    deg = jnp.sum(adj, axis=1, keepdims=True)                            # [R, 1]
    return _leaky(_nan_to_num(agg / deg))


def _edge_layer(p, node_feats, edge_feats, e2e_adj, n2e_adj):
    node_embeds = _project(node_feats, p["w_node"])                      # [N, dn]
    edge_embeds = _project(edge_feats, p["w_edge"])                      # [E, de]
    out_nodes = _attn_agg(edge_embeds, node_embeds, p["pn_src"], p["pn_nbr"], n2e_adj, True)
    out_edges = _attn_agg(edge_embeds, edge_embeds, p["pe_src"], p["pe_nbr"], e2e_adj, True)
    return out_nodes, out_edges        # logical layer output = concat(out_nodes, out_edges)


def _node_layer(p, node_feats, edge_feats, n2n_adj, e2n_adj):
    node_embeds = _project(node_feats, p["w_node"])                      # [N, dn]
    edge_embeds = _project(edge_feats, p["w_edge"])                      # [E, de]
    # torch version has no inner nan_to_num on the node-branch importance coefficients
    out_nodes = _attn_agg(node_embeds, node_embeds, p["pn_src"], p["pn_nbr"], n2n_adj, False)
    out_edges = _attn_agg(node_embeds, edge_embeds, p["pe_src"], p["pe_nbr"], e2n_adj, True)
    return out_nodes, out_edges


def _nenn_math(nf, ef, e2e, e2n, n2e, n2n, l1, l2, l3, w4, b4):
    ee1 = _edge_layer(l1, nf, ef, e2e, n2e)       # ([E,dn], [E,de])
    ne = _node_layer(l2, nf, ee1, n2n, e2n)       # ([N,dn], [N,de])
    ee2 = _edge_layer(l3, ne, ee1, e2e, n2e)      # ([E,dn], [E,de])
    logits = _project(ee2, w4) + b4               # [E, classes]
    m = jnp.max(logits, axis=1, keepdims=True)
    ex = jnp.exp(logits - m)
    probs = ex / jnp.sum(ex, axis=1, keepdims=True)
    return probs, ee2


def _unpack(flat):
    nf, ef, e2e, e2n, n2e, n2n = flat[:6]
    l1 = dict(zip(_LAYER_KEYS, flat[6:12]))
    l2 = dict(zip(_LAYER_KEYS, flat[12:18]))
    l3 = dict(zip(_LAYER_KEYS, flat[18:24]))
    w4, b4 = flat[24], flat[25]
    return nf, ef, e2e, e2n, n2e, n2n, l1, l2, l3, w4, b4


# ----------------------------- the single fused Pallas kernel -----------------------------
def _nenn_kernel(*refs):
    in_refs, out_refs = refs[:-3], refs[-3:]
    vals = [r[...] for r in in_refs]
    probs, (emb_n, emb_e) = _nenn_math(*_unpack(vals))
    probs_ref, emb_n_ref, emb_e_ref = out_refs
    probs_ref[...] = probs
    emb_n_ref[...] = emb_n
    emb_e_ref[...] = emb_e


def _vmem_spec():
    return pl.BlockSpec(memory_space=pltpu.MemorySpace.VMEM)


def _split_edge_layer_params(p, dn, de):
    pn, pe = p["p_node"], p["p_edge"]       # [de+dn], [2*de]
    return dict(w_node=p["w_node"], w_edge=p["w_edge"],
                pn_src=pn[None, :de], pn_nbr=pn[None, de:],
                pe_src=pe[None, :de], pe_nbr=pe[None, de:])


def _split_node_layer_params(p, dn, de):
    pn, pe = p["p_node"], p["p_edge"]       # [2*dn], [dn+de]
    return dict(w_node=p["w_node"], w_edge=p["w_edge"],
                pn_src=pn[None, :dn], pn_nbr=pn[None, dn:],
                pe_src=pe[None, :dn], pe_nbr=pe[None, dn:])


@functools.partial(jax.jit, static_argnames=("use_pallas",))
def nenn_forward(params, node_features, edge_features,
                 edge_to_edge_adj, edge_to_node_adj, node_to_edge_adj, node_to_node_adj,
                 use_pallas=True):
    dn = params["layer1"]["w_node"].shape[1]
    de = params["layer1"]["w_edge"].shape[1]
    l1 = _split_edge_layer_params(params["layer1"], dn, de)
    l2 = _split_node_layer_params(params["layer2"], dn, de)
    l3 = _split_edge_layer_params(params["layer3"], dn, de)
    w4 = params["w4"]
    b4 = params["b4"][None, :]

    flat = [node_features, edge_features,
            edge_to_edge_adj, edge_to_node_adj, node_to_edge_adj, node_to_node_adj]
    for lp in (l1, l2, l3):
        flat.extend(lp[k] for k in _LAYER_KEYS)
    flat.extend([w4, b4])

    if not use_pallas:   # pure-JAX reference, identical shared math
        probs, (emb_n, emb_e) = _nenn_math(*_unpack(flat))
        return probs, jnp.concatenate([emb_n, emb_e], axis=1)

    E = edge_features.shape[0]
    classes = w4.shape[1]
    probs, emb_n, emb_e = pl.pallas_call(
        _nenn_kernel,
        out_shape=(jax.ShapeDtypeStruct((E, classes), jnp.float32),
                   jax.ShapeDtypeStruct((E, dn), jnp.float32),
                   jax.ShapeDtypeStruct((E, de), jnp.float32)),
        in_specs=[_vmem_spec() for _ in flat],
        out_specs=(_vmem_spec(), _vmem_spec(), _vmem_spec()),
    )(*flat)
    # Only the user-visible embedding needs assembling; everything upstream stayed in VMEM.
    return probs, jnp.concatenate([emb_n, emb_e], axis=1)


# ----------------------------- deterministic parameter init -----------------------------
def _xavier(key, shape):
    fan_in, fan_out = shape
    bound = float(np.sqrt(6.0 / (fan_in + fan_out)))
    return jax.random.uniform(key, shape, jnp.float32, -bound, bound)


def init_edge_layer(key, node_feat, edge_feat, dn, de):
    k = jax.random.split(key, 4)
    return dict(
        w_node=_xavier(k[0], (node_feat, dn)),
        w_edge=_xavier(k[1], (edge_feat, de)),
        p_edge=jax.random.normal(k[2], (2 * de,), jnp.float32),
        p_node=jax.random.normal(k[3], (de + dn,), jnp.float32),
    )


def init_node_layer(key, node_feat, edge_feat, dn, de):
    k = jax.random.split(key, 4)
    return dict(
        w_node=_xavier(k[0], (node_feat, dn)),
        w_edge=_xavier(k[1], (edge_feat, de)),
        p_node=jax.random.normal(k[2], (2 * dn,), jnp.float32),
        p_edge=jax.random.normal(k[3], (dn + de,), jnp.float32),
    )


# ----------------------------- main -----------------------------
if __name__ == "__main__":
    key = jax.random.PRNGKey(0)
    N, E = 8, 16                  # nodes, edges
    NODE_FEAT, EDGE_FEAT = 8, 8   # input feature sizes
    DN, DE = 8, 8                 # node / edge embed sizes
    CLASSES = 4
    INTER = DN + DE

    keys = jax.random.split(key, 12)
    params = dict(
        layer1=init_edge_layer(keys[0], NODE_FEAT, EDGE_FEAT, DN, DE),
        layer2=init_node_layer(keys[1], NODE_FEAT, INTER, DN, DE),
        layer3=init_edge_layer(keys[2], INTER, INTER, DN, DE),
        w4=_xavier(keys[3], (INTER, CLASSES)),
        b4=0.1 * jax.random.normal(keys[4], (CLASSES,), jnp.float32),
    )

    node_features = jax.random.normal(keys[5], (N, NODE_FEAT), jnp.float32)
    edge_features = jax.random.normal(keys[6], (E, EDGE_FEAT), jnp.float32)
    edge_to_edge_adj = (jax.random.uniform(keys[7], (E, E)) < 0.5).astype(jnp.float32)
    edge_to_node_adj = (jax.random.uniform(keys[8], (N, E)) < 0.5).astype(jnp.float32)
    node_to_edge_adj = (jax.random.uniform(keys[9], (E, N)) < 0.5).astype(jnp.float32)
    node_to_node_adj = (jax.random.uniform(keys[10], (N, N)) < 0.5).astype(jnp.float32)

    probs, edge_embeds2 = nenn_forward(
        params, node_features, edge_features,
        edge_to_edge_adj, edge_to_node_adj, node_to_edge_adj, node_to_node_adj,
        use_pallas=True,
    )
    probs = jax.block_until_ready(probs)
    edge_embeds2 = jax.block_until_ready(edge_embeds2)

    # pure-JAX reference (identical shared math, no Pallas) for a sanity check
    probs_ref, embeds_ref = nenn_forward(
        params, node_features, edge_features,
        edge_to_edge_adj, edge_to_node_adj, node_to_edge_adj, node_to_node_adj,
        use_pallas=False,
    )

    assert probs.shape == (E, CLASSES) and edge_embeds2.shape == (E, INTER)
    assert np.all(np.isfinite(np.asarray(probs)))
    np.testing.assert_allclose(np.asarray(probs), np.asarray(probs_ref), rtol=1e-2, atol=1e-3)
    np.testing.assert_allclose(np.asarray(edge_embeds2), np.asarray(embeds_ref), rtol=1e-2, atol=1e-3)
    print("KERNEL_OK")
</pallas_src>

<mosaic_0001>
module attributes {stable_mosaic.version = 11 : i64} {
  func.func @_nenn_kernel(%arg0: memref<8x8xf32, #tpu.memory_space<vmem>>, %arg1: memref<16x8xf32, #tpu.memory_space<vmem>>, %arg2: memref<16x16xf32, #tpu.memory_space<vmem>>, %arg3: memref<8x16xf32, #tpu.memory_space<vmem>>, %arg4: memref<16x8xf32, #tpu.memory_space<vmem>>, %arg5: memref<8x8xf32, #tpu.memory_space<vmem>>, %arg6: memref<8x8xf32, #tpu.memory_space<vmem>>, %arg7: memref<8x8xf32, #tpu.memory_space<vmem>>, %arg8: memref<1x8xf32, #tpu.memory_space<vmem>>, %arg9: memref<1x8xf32, #tpu.memory_space<vmem>>, %arg10: memref<1x8xf32, #tpu.memory_space<vmem>>, %arg11: memref<1x8xf32, #tpu.memory_space<vmem>>, %arg12: memref<8x8xf32, #tpu.memory_space<vmem>>, %arg13: memref<16x8xf32, #tpu.memory_space<vmem>>, %arg14: memref<1x8xf32, #tpu.memory_space<vmem>>, %arg15: memref<1x8xf32, #tpu.memory_space<vmem>>, %arg16: memref<1x8xf32, #tpu.memory_space<vmem>>, %arg17: memref<1x8xf32, #tpu.memory_space<vmem>>, %arg18: memref<16x8xf32, #tpu.memory_space<vmem>>, %arg19: memref<16x8xf32, #tpu.memory_space<vmem>>, %arg20: memref<1x8xf32, #tpu.memory_space<vmem>>, %arg21: memref<1x8xf32, #tpu.memory_space<vmem>>, %arg22: memref<1x8xf32, #tpu.memory_space<vmem>>, %arg23: memref<1x8xf32, #tpu.memory_space<vmem>>, %arg24: memref<16x4xf32, #tpu.memory_space<vmem>>, %arg25: memref<1x4xf32, #tpu.memory_space<vmem>>, %arg26: memref<16x4xf32, #tpu.memory_space<vmem>>, %arg27: memref<16x8xf32, #tpu.memory_space<vmem>>, %arg28: memref<16x8xf32, #tpu.memory_space<vmem>>) attributes {dimension_semantics = [], scalar_prefetch = 0 : i64, scratch_operands = 0 : i64, tpu.core_type = #tpu.core_type<tc>} {
    %c0 = arith.constant 0 : index
    %c0_0 = arith.constant 0 : index
    %0 = vector.load %arg0[%c0, %c0_0] : memref<8x8xf32, #tpu.memory_space<vmem>>, vector<8x8xf32>
    %c0_1 = arith.constant 0 : index
    %c0_2 = arith.constant 0 : index
    %1 = vector.load %arg1[%c0_1, %c0_2] : memref<16x8xf32, #tpu.memory_space<vmem>>, vector<16x8xf32>
    %c0_3 = arith.constant 0 : index
    %c0_4 = arith.constant 0 : index
    %2 = vector.load %arg2[%c0_3, %c0_4] : memref<16x16xf32, #tpu.memory_space<vmem>>, vector<16x16xf32>
    %c0_5 = arith.constant 0 : index
    %c0_6 = arith.constant 0 : index
    %3 = vector.load %arg3[%c0_5, %c0_6] : memref<8x16xf32, #tpu.memory_space<vmem>>, vector<8x16xf32>
    %c0_7 = arith.constant 0 : index
    %c0_8 = arith.constant 0 : index
    %4 = vector.load %arg4[%c0_7, %c0_8] : memref<16x8xf32, #tpu.memory_space<vmem>>, vector<16x8xf32>
    %c0_9 = arith.constant 0 : index
    %c0_10 = arith.constant 0 : index
    %5 = vector.load %arg5[%c0_9, %c0_10] : memref<8x8xf32, #tpu.memory_space<vmem>>, vector<8x8xf32>
    %c0_11 = arith.constant 0 : index
    %c0_12 = arith.constant 0 : index
    %6 = vector.load %arg6[%c0_11, %c0_12] : memref<8x8xf32, #tpu.memory_space<vmem>>, vector<8x8xf32>
    %c0_13 = arith.constant 0 : index
    %c0_14 = arith.constant 0 : index
    %7 = vector.load %arg7[%c0_13, %c0_14] : memref<8x8xf32, #tpu.memory_space<vmem>>, vector<8x8xf32>
    %c0_15 = arith.constant 0 : index
    %c0_16 = arith.constant 0 : index
    %8 = vector.load %arg8[%c0_15, %c0_16] : memref<1x8xf32, #tpu.memory_space<vmem>>, vector<1x8xf32>
    %c0_17 = arith.constant 0 : index
    %c0_18 = arith.constant 0 : index
    %9 = vector.load %arg9[%c0_17, %c0_18] : memref<1x8xf32, #tpu.memory_space<vmem>>, vector<1x8xf32>
    %c0_19 = arith.constant 0 : index
    %c0_20 = arith.constant 0 : index
    %10 = vector.load %arg10[%c0_19, %c0_20] : memref<1x8xf32, #tpu.memory_space<vmem>>, vector<1x8xf32>
    %c0_21 = arith.constant 0 : index
    %c0_22 = arith.constant 0 : index
    %11 = vector.load %arg11[%c0_21, %c0_22] : memref<1x8xf32, #tpu.memory_space<vmem>>, vector<1x8xf32>
    %c0_23 = arith.constant 0 : index
    %c0_24 = arith.constant 0 : index
    %12 = vector.load %arg12[%c0_23, %c0_24] : memref<8x8xf32, #tpu.memory_space<vmem>>, vector<8x8xf32>
    %c0_25 = arith.constant 0 : index
    %c0_26 = arith.constant 0 : index
    %13 = vector.load %arg13[%c0_25, %c0_26] : memref<16x8xf32, #tpu.memory_space<vmem>>, vector<16x8xf32>
    %c0_27 = arith.constant 0 : index
    %c0_28 = arith.constant 0 : index
    %14 = vector.load %arg14[%c0_27, %c0_28] : memref<1x8xf32, #tpu.memory_space<vmem>>, vector<1x8xf32>
    %c0_29 = arith.constant 0 : index
    %c0_30 = arith.constant 0 : index
    %15 = vector.load %arg15[%c0_29, %c0_30] : memref<1x8xf32, #tpu.memory_space<vmem>>, vector<1x8xf32>
    %c0_31 = arith.constant 0 : index
    %c0_32 = arith.constant 0 : index
    %16 = vector.load %arg16[%c0_31, %c0_32] : memref<1x8xf32, #tpu.memory_space<vmem>>, vector<1x8xf32>
    %c0_33 = arith.constant 0 : index
    %c0_34 = arith.constant 0 : index
    %17 = vector.load %arg17[%c0_33, %c0_34] : memref<1x8xf32, #tpu.memory_space<vmem>>, vector<1x8xf32>
    %c0_35 = arith.constant 0 : index
    %c0_36 = arith.constant 0 : index
    %18 = vector.load %arg18[%c0_35, %c0_36] : memref<16x8xf32, #tpu.memory_space<vmem>>, vector<16x8xf32>
    %c0_37 = arith.constant 0 : index
    %c0_38 = arith.constant 0 : index
    %19 = vector.load %arg19[%c0_37, %c0_38] : memref<16x8xf32, #tpu.memory_space<vmem>>, vector<16x8xf32>
    %c0_39 = arith.constant 0 : index
    %c0_40 = arith.constant 0 : index
    %20 = vector.load %arg20[%c0_39, %c0_40] : memref<1x8xf32, #tpu.memory_space<vmem>>, vector<1x8xf32>
    %c0_41 = arith.constant 0 : index
    %c0_42 = arith.constant 0 : index
    %21 = vector.load %arg21[%c0_41, %c0_42] : memref<1x8xf32, #tpu.memory_space<vmem>>, vector<1x8xf32>
    %c0_43 = arith.constant 0 : index
    %c0_44 = arith.constant 0 : index
    %22 = vector.load %arg22[%c0_43, %c0_44] : memref<1x8xf32, #tpu.memory_space<vmem>>, vector<1x8xf32>
    %c0_45 = arith.constant 0 : index
    %c0_46 = arith.constant 0 : index
    %23 = vector.load %arg23[%c0_45, %c0_46] : memref<1x8xf32, #tpu.memory_space<vmem>>, vector<1x8xf32>
    %c0_47 = arith.constant 0 : index
    %c0_48 = arith.constant 0 : index
    %24 = vector.load %arg24[%c0_47, %c0_48] : memref<16x4xf32, #tpu.memory_space<vmem>>, vector<16x4xf32>
    %c0_49 = arith.constant 0 : index
    %c0_50 = arith.constant 0 : index
    %25 = vector.load %arg25[%c0_49, %c0_50] : memref<1x4xf32, #tpu.memory_space<vmem>>, vector<1x4xf32>
    %26 = arith.truncf %0 : vector<8x8xf32> to vector<8x8xbf16>
    %27 = arith.truncf %6 : vector<8x8xf32> to vector<8x8xbf16>
    %cst = arith.constant dense<0.000000e+00> : vector<8x8xf32>
    %28 = tpu.matmul %26, %27, %cst {dimension_numbers = #tpu.dot_dimension_numbers<[1], [0], [0], [1], [0, 0, 1, 1], [], []>} : vector<8x8xbf16>, vector<8x8xbf16>, vector<8x8xf32> -> vector<8x8xf32>
    %29 = arith.truncf %1 : vector<16x8xf32> to vector<16x8xbf16>
    %30 = arith.truncf %7 : vector<8x8xf32> to vector<8x8xbf16>
    %cst_51 = arith.constant dense<0.000000e+00> : vector<16x8xf32>
    %31 = tpu.matmul %29, %30, %cst_51 {dimension_numbers = #tpu.dot_dimension_numbers<[1], [0], [0], [1], [0, 0, 1, 1], [], []>} : vector<16x8xbf16>, vector<8x8xbf16>, vector<16x8xf32> -> vector<16x8xf32>
    %32 = vector.broadcast %8 : vector<1x8xf32> to vector<16x8xf32>
    %33 = arith.mulf %31, %32 : vector<16x8xf32>
    %cst_52 = arith.constant dense<0.000000e+00> : vector<16xf32>
    %34 = vector.multi_reduction <add>, %33, %cst_52 [1] : vector<16x8xf32> to vector<16xf32>
    %35 = vector.shape_cast %34 : vector<16xf32> to vector<16x1xf32>
    %36 = arith.truncf %9 : vector<1x8xf32> to vector<1x8xbf16>
    %37 = arith.truncf %28 : vector<8x8xf32> to vector<8x8xbf16>
    %cst_53 = arith.constant dense<0.000000e+00> : vector<1x8xf32>
    %38 = tpu.matmul %36, %37, %cst_53 {dimension_numbers = #tpu.dot_dimension_numbers<[1], [1], [0], [0], [0, 0, 1, 0], [], []>} : vector<1x8xbf16>, vector<8x8xbf16>, vector<1x8xf32> -> vector<1x8xf32>
    %39 = vector.broadcast %35 : vector<16x1xf32> to vector<16x8xf32>
    %40 = vector.broadcast %38 : vector<1x8xf32> to vector<16x8xf32>
    %41 = arith.addf %39, %40 : vector<16x8xf32>
    %cst_54 = arith.constant 0.000000e+00 : f32
    %42 = vector.broadcast %cst_54 : f32 to vector<16x8xf32>
    %43 = arith.cmpf oge, %41, %42 : vector<16x8xf32>
    %cst_55 = arith.constant 0.00999999977 : f32
    %44 = vector.broadcast %cst_55 : f32 to vector<16x8xf32>
    %45 = arith.mulf %44, %41 : vector<16x8xf32>
    %46 = arith.select %43, %41, %45 : vector<16x8xi1>, vector<16x8xf32>
    %47 = math.exp %46 : vector<16x8xf32>
    %48 = arith.mulf %47, %4 : vector<16x8xf32>
    %cst_56 = arith.constant dense<0.000000e+00> : vector<16xf32>
    %49 = vector.multi_reduction <add>, %48, %cst_56 [1] : vector<16x8xf32> to vector<16xf32>
    %50 = vector.shape_cast %49 : vector<16xf32> to vector<16x1xf32>
    %51 = vector.broadcast %50 : vector<16x1xf32> to vector<16x8xf32>
    %52 = arith.divf %47, %51 : vector<16x8xf32>
    %53 = arith.mulf %52, %4 : vector<16x8xf32>
    %54 = arith.cmpf one, %53, %53 : vector<16x8xf32>
    %cst_57 = arith.constant 0.000000e+00 : f32
    %55 = vector.broadcast %cst_57 : f32 to vector<16x8xf32>
    %56 = arith.select %54, %55, %53 : vector<16x8xi1>, vector<16x8xf32>
    %cst_58 = arith.constant 0x7F800000 : f32
    %57 = vector.broadcast %cst_58 : f32 to vector<16x8xf32>
    %58 = arith.cmpf oeq, %56, %57 : vector<16x8xf32>
    %cst_59 = arith.constant 3.40282347E+38 : f32
    %59 = vector.broadcast %cst_59 : f32 to vector<16x8xf32>
    %60 = arith.select %58, %59, %56 : vector<16x8xi1>, vector<16x8xf32>
    %cst_60 = arith.constant 0xFF800000 : f32
    %61 = vector.broadcast %cst_60 : f32 to vector<16x8xf32>
    %62 = arith.cmpf oeq, %60, %61 : vector<16x8xf32>
    %cst_61 = arith.constant -3.40282347E+38 : f32
    %63 = vector.broadcast %cst_61 : f32 to vector<16x8xf32>
    %64 = arith.select %62, %63, %60 : vector<16x8xi1>, vector<16x8xf32>
    %65 = arith.truncf %64 : vector<16x8xf32> to vector<16x8xbf16>
    %66 = arith.truncf %28 : vector<8x8xf32> to vector<8x8xbf16>
    %cst_62 = arith.constant dense<0.000000e+00> : vector<16x8xf32>
    %67 = tpu.matmul %65, %66, %cst_62 {dimension_numbers = #tpu.dot_dimension_numbers<[1], [0], [0], [1], [0, 0, 1, 1], [], []>} : vector<16x8xbf16>, vector<8x8xbf16>, vector<16x8xf32> -> vector<16x8xf32>
    %cst_63 = arith.constant dense<0.000000e+00> : vector<16xf32>
    %68 = vector.multi_reduction <add>, %4, %cst_63 [1] : vector<16x8xf32> to vector<16xf32>
    %69 = vector.shape_cast %68 : vector<16xf32> to vector<16x1xf32>
    %70 = vector.broadcast %69 : vector<16x1xf32> to vector<16x8xf32>
    %71 = arith.divf %67, %70 : vector<16x8xf32>
    %72 = arith.cmpf one, %71, %71 : vector<16x8xf32>
    %cst_64 = arith.constant 0.000000e+00 : f32
    %73 = vector.broadcast %cst_64 : f32 to vector<16x8xf32>
    %74 = arith.select %72, %73, %71 : vector<16x8xi1>, vector<16x8xf32>
    %cst_65 = arith.constant 0x7F800000 : f32
    %75 = vector.broadcast %cst_65 : f32 to vector<16x8xf32>
    %76 = arith.cmpf oeq, %74, %75 : vector<16x8xf32>
    %cst_66 = arith.constant 3.40282347E+38 : f32
    %77 = vector.broadcast %cst_66 : f32 to vector<16x8xf32>
    %78 = arith.select %76, %77, %74 : vector<16x8xi1>, vector<16x8xf32>
    %cst_67 = arith.constant 0xFF800000 : f32
    %79 = vector.broadcast %cst_67 : f32 to vector<16x8xf32>
    %80 = arith.cmpf oeq, %78, %79 : vector<16x8xf32>
    %cst_68 = arith.constant -3.40282347E+38 : f32
    %81 = vector.broadcast %cst_68 : f32 to vector<16x8xf32>
    %82 = arith.select %80, %81, %78 : vector<16x8xi1>, vector<16x8xf32>
    %cst_69 = arith.constant 0.000000e+00 : f32
    %83 = vector.broadcast %cst_69 : f32 to vector<16x8xf32>
    %84 = arith.cmpf oge, %82, %83 : vector<16x8xf32>
    %cst_70 = arith.constant 0.00999999977 : f32
    %85 = vector.broadcast %cst_70 : f32 to vector<16x8xf32>
    %86 = arith.mulf %85, %82 : vector<16x8xf32>
    %87 = arith.select %84, %82, %86 : vector<16x8xi1>, vector<16x8xf32>
    %88 = vector.broadcast %10 : vector<1x8xf32> to vector<16x8xf32>
    %89 = arith.mulf %31, %88 : vector<16x8xf32>
    %cst_71 = arith.constant dense<0.000000e+00> : vector<16xf32>
    %90 = vector.multi_reduction <add>, %89, %cst_71 [1] : vector<16x8xf32> to vector<16xf32>
    %91 = vector.shape_cast %90 : vector<16xf32> to vector<16x1xf32>
    %92 = arith.truncf %11 : vector<1x8xf32> to vector<1x8xbf16>
    %93 = arith.truncf %31 : vector<16x8xf32> to vector<16x8xbf16>
    %cst_72 = arith.constant dense<0.000000e+00> : vector<1x16xf32>
    %94 = tpu.matmul %92, %93, %cst_72 {dimension_numbers = #tpu.dot_dimension_numbers<[1], [1], [0], [0], [0, 0, 1, 0], [], []>} : vector<1x8xbf16>, vector<16x8xbf16>, vector<1x16xf32> -> vector<1x16xf32>
    %95 = vector.broadcast %91 : vector<16x1xf32> to vector<16x16xf32>
    %96 = vector.broadcast %94 : vector<1x16xf32> to vector<16x16xf32>
    %97 = arith.addf %95, %96 : vector<16x16xf32>
    %cst_73 = arith.constant 0.000000e+00 : f32
    %98 = vector.broadcast %cst_73 : f32 to vector<16x16xf32>
    %99 = arith.cmpf oge, %97, %98 : vector<16x16xf32>
    %cst_74 = arith.constant 0.00999999977 : f32
    %100 = vector.broadcast %cst_74 : f32 to vector<16x16xf32>
    %101 = arith.mulf %100, %97 : vector<16x16xf32>
    %102 = arith.select %99, %97, %101 : vector<16x16xi1>, vector<16x16xf32>
    %103 = math.exp %102 : vector<16x16xf32>
    %104 = arith.mulf %103, %2 : vector<16x16xf32>
    %cst_75 = arith.constant dense<0.000000e+00> : vector<16xf32>
    %105 = vector.multi_reduction <add>, %104, %cst_75 [1] : vector<16x16xf32> to vector<16xf32>
    %106 = vector.shape_cast %105 : vector<16xf32> to vector<16x1xf32>
    %107 = vector.broadcast %106 : vector<16x1xf32> to vector<16x16xf32>
    %108 = arith.divf %103, %107 : vector<16x16xf32>
    %109 = arith.mulf %108, %2 : vector<16x16xf32>
    %110 = arith.cmpf one, %109, %109 : vector<16x16xf32>
    %cst_76 = arith.constant 0.000000e+00 : f32
    %111 = vector.broadcast %cst_76 : f32 to vector<16x16xf32>
    %112 = arith.select %110, %111, %109 : vector<16x16xi1>, vector<16x16xf32>
    %cst_77 = arith.constant 0x7F800000 : f32
    %113 = vector.broadcast %cst_77 : f32 to vector<16x16xf32>
    %114 = arith.cmpf oeq, %112, %113 : vector<16x16xf32>
    %cst_78 = arith.constant 3.40282347E+38 : f32
    %115 = vector.broadcast %cst_78 : f32 to vector<16x16xf32>
    %116 = arith.select %114, %115, %112 : vector<16x16xi1>, vector<16x16xf32>
    %cst_79 = arith.constant 0xFF800000 : f32
    %117 = vector.broadcast %cst_79 : f32 to vector<16x16xf32>
    %118 = arith.cmpf oeq, %116, %117 : vector<16x16xf32>
    %cst_80 = arith.constant -3.40282347E+38 : f32
    %119 = vector.broadcast %cst_80 : f32 to vector<16x16xf32>
    %120 = arith.select %118, %119, %116 : vector<16x16xi1>, vector<16x16xf32>
    %121 = arith.truncf %120 : vector<16x16xf32> to vector<16x16xbf16>
    %122 = arith.truncf %31 : vector<16x8xf32> to vector<16x8xbf16>
    %cst_81 = arith.constant dense<0.000000e+00> : vector<16x8xf32>
    %123 = tpu.matmul %121, %122, %cst_81 {dimension_numbers = #tpu.dot_dimension_numbers<[1], [0], [0], [1], [0, 0, 1, 1], [], []>} : vector<16x16xbf16>, vector<16x8xbf16>, vector<16x8xf32> -> vector<16x8xf32>
    %cst_82 = arith.constant dense<0.000000e+00> : vector<16xf32>
    %124 = vector.multi_reduction <add>, %2, %cst_82 [1] : vector<16x16xf32> to vector<16xf32>
    %125 = vector.shape_cast %124 : vector<16xf32> to vector<16x1xf32>
    %126 = vector.broadcast %125 : vector<16x1xf32> to vector<16x8xf32>
    %127 = arith.divf %123, %126 : vector<16x8xf32>
    %128 = arith.cmpf one, %127, %127 : vector<16x8xf32>
    %cst_83 = arith.constant 0.000000e+00 : f32
    %129 = vector.broadcast %cst_83 : f32 to vector<16x8xf32>
    %130 = arith.select %128, %129, %127 : vector<16x8xi1>, vector<16x8xf32>
    %cst_84 = arith.constant 0x7F800000 : f32
    %131 = vector.broadcast %cst_84 : f32 to vector<16x8xf32>
    %132 = arith.cmpf oeq, %130, %131 : vector<16x8xf32>
    %cst_85 = arith.constant 3.40282347E+38 : f32
    %133 = vector.broadcast %cst_85 : f32 to vector<16x8xf32>
    %134 = arith.select %132, %133, %130 : vector<16x8xi1>, vector<16x8xf32>
    %cst_86 = arith.constant 0xFF800000 : f32
    %135 = vector.broadcast %cst_86 : f32 to vector<16x8xf32>
    %136 = arith.cmpf oeq, %134, %135 : vector<16x8xf32>
    %cst_87 = arith.constant -3.40282347E+38 : f32
    %137 = vector.broadcast %cst_87 : f32 to vector<16x8xf32>
    %138 = arith.select %136, %137, %134 : vector<16x8xi1>, vector<16x8xf32>
    %cst_88 = arith.constant 0.000000e+00 : f32
    %139 = vector.broadcast %cst_88 : f32 to vector<16x8xf32>
    %140 = arith.cmpf oge, %138, %139 : vector<16x8xf32>
    %cst_89 = arith.constant 0.00999999977 : f32
    %141 = vector.broadcast %cst_89 : f32 to vector<16x8xf32>
    %142 = arith.mulf %141, %138 : vector<16x8xf32>
    %143 = arith.select %140, %138, %142 : vector<16x8xi1>, vector<16x8xf32>
    %144 = arith.truncf %0 : vector<8x8xf32> to vector<8x8xbf16>
    %145 = arith.truncf %12 : vector<8x8xf32> to vector<8x8xbf16>
    %cst_90 = arith.constant dense<0.000000e+00> : vector<8x8xf32>
    %146 = tpu.matmul %144, %145, %cst_90 {dimension_numbers = #tpu.dot_dimension_numbers<[1], [0], [0], [1], [0, 0, 1, 1], [], []>} : vector<8x8xbf16>, vector<8x8xbf16>, vector<8x8xf32> -> vector<8x8xf32>
    %147 = vector.extract_strided_slice %13 {offsets = [0, 0], sizes = [8, 8], strides = [1, 1]} : vector<16x8xf32> to vector<8x8xf32>
    %148 = arith.truncf %87 : vector<16x8xf32> to vector<16x8xbf16>
    %149 = arith.truncf %147 : vector<8x8xf32> to vector<8x8xbf16>
    %cst_91 = arith.constant dense<0.000000e+00> : vector<16x8xf32>
    %150 = tpu.matmul %148, %149, %cst_91 {dimension_numbers = #tpu.dot_dimension_numbers<[1], [0], [0], [1], [0, 0, 1, 1], [], []>} : vector<16x8xbf16>, vector<8x8xbf16>, vector<16x8xf32> -> vector<16x8xf32>
    %151 = vector.extract_strided_slice %13 {offsets = [8, 0], sizes = [8, 8], strides = [1, 1]} : vector<16x8xf32> to vector<8x8xf32>
    %152 = arith.truncf %143 : vector<16x8xf32> to vector<16x8xbf16>
    %153 = arith.truncf %151 : vector<8x8xf32> to vector<8x8xbf16>
    %cst_92 = arith.constant dense<0.000000e+00> : vector<16x8xf32>
    %154 = tpu.matmul %152, %153, %cst_92 {dimension_numbers = #tpu.dot_dimension_numbers<[1], [0], [0], [1], [0, 0, 1, 1], [], []>} : vector<16x8xbf16>, vector<8x8xbf16>, vector<16x8xf32> -> vector<16x8xf32>
    %155 = arith.addf %150, %154 : vector<16x8xf32>
    %156 = vector.broadcast %14 : vector<1x8xf32> to vector<8x8xf32>
    %157 = arith.mulf %146, %156 : vector<8x8xf32>
    %cst_93 = arith.constant dense<0.000000e+00> : vector<8xf32>
    %158 = vector.multi_reduction <add>, %157, %cst_93 [1] : vector<8x8xf32> to vector<8xf32>
    %159 = vector.shape_cast %158 : vector<8xf32> to vector<8x1xf32>
    %160 = arith.truncf %15 : vector<1x8xf32> to vector<1x8xbf16>
    %161 = arith.truncf %146 : vector<8x8xf32> to vector<8x8xbf16>
    %cst_94 = arith.constant dense<0.000000e+00> : vector<1x8xf32>
    %162 = tpu.matmul %160, %161, %cst_94 {dimension_numbers = #tpu.dot_dimension_numbers<[1], [1], [0], [0], [0, 0, 1, 0], [], []>} : vector<1x8xbf16>, vector<8x8xbf16>, vector<1x8xf32> -> vector<1x8xf32>
    %163 = vector.broadcast %159 : vector<8x1xf32> to vector<8x8xf32>
    %164 = vector.broadcast %162 : vector<1x8xf32> to vector<8x8xf32>
    %165 = arith.addf %163, %164 : vector<8x8xf32>
    %cst_95 = arith.constant 0.000000e+00 : f32
    %166 = vector.broadcast %cst_95 : f32 to vector<8x8xf32>
    %167 = arith.cmpf oge, %165, %166 : vector<8x8xf32>
    %cst_96 = arith.constant 0.00999999977 : f32
    %168 = vector.broadcast %cst_96 : f32 to vector<8x8xf32>
    %169 = arith.mulf %168, %165 : vector<8x8xf32>
    %170 = arith.select %167, %165, %169 : vector<8x8xi1>, vector<8x8xf32>
    %171 = math.exp %170 : vector<8x8xf32>
    %172 = arith.mulf %171, %5 : vector<8x8xf32>
    %cst_97 = arith.constant dense<0.000000e+00> : vector<8xf32>
    %173 = vector.multi_reduction <add>, %172, %cst_97 [1] : vector<8x8xf32> to vector<8xf32>
    %174 = vector.shape_cast %173 : vector<8xf32> to vector<8x1xf32>
    %175 = vector.broadcast %174 : vector<8x1xf32> to vector<8x8xf32>
    %176 = arith.divf %171, %175 : vector<8x8xf32>
    %177 = arith.mulf %176, %5 : vector<8x8xf32>
    %178 = arith.truncf %177 : vector<8x8xf32> to vector<8x8xbf16>
    %179 = arith.truncf %146 : vector<8x8xf32> to vector<8x8xbf16>
    %cst_98 = arith.constant dense<0.000000e+00> : vector<8x8xf32>
    %180 = tpu.matmul %178, %179, %cst_98 {dimension_numbers = #tpu.dot_dimension_numbers<[1], [0], [0], [1], [0, 0, 1, 1], [], []>} : vector<8x8xbf16>, vector<8x8xbf16>, vector<8x8xf32> -> vector<8x8xf32>
    %cst_99 = arith.constant dense<0.000000e+00> : vector<8xf32>
    %181 = vector.multi_reduction <add>, %5, %cst_99 [1] : vector<8x8xf32> to vector<8xf32>
    %182 = vector.shape_cast %181 : vector<8xf32> to vector<8x1xf32>
    %183 = vector.broadcast %182 : vector<8x1xf32> to vector<8x8xf32>
    %184 = arith.divf %180, %183 : vector<8x8xf32>
    %185 = arith.cmpf one, %184, %184 : vector<8x8xf32>
    %cst_100 = arith.constant 0.000000e+00 : f32
    %186 = vector.broadcast %cst_100 : f32 to vector<8x8xf32>
    %187 = arith.select %185, %186, %184 : vector<8x8xi1>, vector<8x8xf32>
    %cst_101 = arith.constant 0x7F800000 : f32
    %188 = vector.broadcast %cst_101 : f32 to vector<8x8xf32>
    %189 = arith.cmpf oeq, %187, %188 : vector<8x8xf32>
    %cst_102 = arith.constant 3.40282347E+38 : f32
    %190 = vector.broadcast %cst_102 : f32 to vector<8x8xf32>
    %191 = arith.select %189, %190, %187 : vector<8x8xi1>, vector<8x8xf32>
    %cst_103 = arith.constant 0xFF800000 : f32
    %192 = vector.broadcast %cst_103 : f32 to vector<8x8xf32>
    %193 = arith.cmpf oeq, %191, %192 : vector<8x8xf32>
    %cst_104 = arith.constant -3.40282347E+38 : f32
    %194 = vector.broadcast %cst_104 : f32 to vector<8x8xf32>
    %195 = arith.select %193, %194, %191 : vector<8x8xi1>, vector<8x8xf32>
    %cst_105 = arith.constant 0.000000e+00 : f32
    %196 = vector.broadcast %cst_105 : f32 to vector<8x8xf32>
    %197 = arith.cmpf oge, %195, %196 : vector<8x8xf32>
    %cst_106 = arith.constant 0.00999999977 : f32
    %198 = vector.broadcast %cst_106 : f32 to vector<8x8xf32>
    %199 = arith.mulf %198, %195 : vector<8x8xf32>
    %200 = arith.select %197, %195, %199 : vector<8x8xi1>, vector<8x8xf32>
    %201 = vector.broadcast %16 : vector<1x8xf32> to vector<8x8xf32>
    %202 = arith.mulf %146, %201 : vector<8x8xf32>
    %cst_107 = arith.constant dense<0.000000e+00> : vector<8xf32>
    %203 = vector.multi_reduction <add>, %202, %cst_107 [1] : vector<8x8xf32> to vector<8xf32>
    %204 = vector.shape_cast %203 : vector<8xf32> to vector<8x1xf32>
    %205 = arith.truncf %17 : vector<1x8xf32> to vector<1x8xbf16>
    %206 = arith.truncf %155 : vector<16x8xf32> to vector<16x8xbf16>
    %cst_108 = arith.constant dense<0.000000e+00> : vector<1x16xf32>
    %207 = tpu.matmul %205, %206, %cst_108 {dimension_numbers = #tpu.dot_dimension_numbers<[1], [1], [0], [0], [0, 0, 1, 0], [], []>} : vector<1x8xbf16>, vector<16x8xbf16>, vector<1x16xf32> -> vector<1x16xf32>
    %208 = vector.broadcast %204 : vector<8x1xf32> to vector<8x16xf32>
    %209 = vector.broadcast %207 : vector<1x16xf32> to vector<8x16xf32>
    %210 = arith.addf %208, %209 : vector<8x16xf32>
    %cst_109 = arith.constant 0.000000e+00 : f32
    %211 = vector.broadcast %cst_109 : f32 to vector<8x16xf32>
    %212 = arith.cmpf oge, %210, %211 : vector<8x16xf32>
    %cst_110 = arith.constant 0.00999999977 : f32
    %213 = vector.broadcast %cst_110 : f32 to vector<8x16xf32>
    %214 = arith.mulf %213, %210 : vector<8x16xf32>
    %215 = arith.select %212, %210, %214 : vector<8x16xi1>, vector<8x16xf32>
    %216 = math.exp %215 : vector<8x16xf32>
    %217 = arith.mulf %216, %3 : vector<8x16xf32>
    %cst_111 = arith.constant dense<0.000000e+00> : vector<8xf32>
    %218 = vector.multi_reduction <add>, %217, %cst_111 [1] : vector<8x16xf32> to vector<8xf32>
    %219 = vector.shape_cast %218 : vector<8xf32> to vector<8x1xf32>
    %220 = vector.broadcast %219 : vector<8x1xf32> to vector<8x16xf32>
    %221 = arith.divf %216, %220 : vector<8x16xf32>
    %222 = arith.mulf %221, %3 : vector<8x16xf32>
    %223 = arith.cmpf one, %222, %222 : vector<8x16xf32>
    %cst_112 = arith.constant 0.000000e+00 : f32
    %224 = vector.broadcast %cst_112 : f32 to vector<8x16xf32>
    %225 = arith.select %223, %224, %222 : vector<8x16xi1>, vector<8x16xf32>
    %cst_113 = arith.constant 0x7F800000 : f32
    %226 = vector.broadcast %cst_113 : f32 to vector<8x16xf32>
    %227 = arith.cmpf oeq, %225, %226 : vector<8x16xf32>
    %cst_114 = arith.constant 3.40282347E+38 : f32
    %228 = vector.broadcast %cst_114 : f32 to vector<8x16xf32>
    %229 = arith.select %227, %228, %225 : vector<8x16xi1>, vector<8x16xf32>
    %cst_115 = arith.constant 0xFF800000 : f32
    %230 = vector.broadcast %cst_115 : f32 to vector<8x16xf32>
    %231 = arith.cmpf oeq, %229, %230 : vector<8x16xf32>
    %cst_116 = arith.constant -3.40282347E+38 : f32
    %232 = vector.broadcast %cst_116 : f32 to vector<8x16xf32>
    %233 = arith.select %231, %232, %229 : vector<8x16xi1>, vector<8x16xf32>
    %234 = arith.truncf %233 : vector<8x16xf32> to vector<8x16xbf16>
    %235 = arith.truncf %155 : vector<16x8xf32> to vector<16x8xbf16>
    %cst_117 = arith.constant dense<0.000000e+00> : vector<8x8xf32>
    %236 = tpu.matmul %234, %235, %cst_117 {dimension_numbers = #tpu.dot_dimension_numbers<[1], [0], [0], [1], [0, 0, 1, 1], [], []>} : vector<8x16xbf16>, vector<16x8xbf16>, vector<8x8xf32> -> vector<8x8xf32>
    %cst_118 = arith.constant dense<0.000000e+00> : vector<8xf32>
    %237 = vector.multi_reduction <add>, %3, %cst_118 [1] : vector<8x16xf32> to vector<8xf32>
    %238 = vector.shape_cast %237 : vector<8xf32> to vector<8x1xf32>
    %239 = vector.broadcast %238 : vector<8x1xf32> to vector<8x8xf32>
    %240 = arith.divf %236, %239 : vector<8x8xf32>
    %241 = arith.cmpf one, %240, %240 : vector<8x8xf32>
    %cst_119 = arith.constant 0.000000e+00 : f32
    %242 = vector.broadcast %cst_119 : f32 to vector<8x8xf32>
    %243 = arith.select %241, %242, %240 : vector<8x8xi1>, vector<8x8xf32>
    %cst_120 = arith.constant 0x7F800000 : f32
    %244 = vector.broadcast %cst_120 : f32 to vector<8x8xf32>
    %245 = arith.cmpf oeq, %243, %244 : vector<8x8xf32>
    %cst_121 = arith.constant 3.40282347E+38 : f32
    %246 = vector.broadcast %cst_121 : f32 to vector<8x8xf32>
    %247 = arith.select %245, %246, %243 : vector<8x8xi1>, vector<8x8xf32>
    %cst_122 = arith.constant 0xFF800000 : f32
    %248 = vector.broadcast %cst_122 : f32 to vector<8x8xf32>
    %249 = arith.cmpf oeq, %247, %248 : vector<8x8xf32>
    %cst_123 = arith.constant -3.40282347E+38 : f32
    %250 = vector.broadcast %cst_123 : f32 to vector<8x8xf32>
    %251 = arith.select %249, %250, %247 : vector<8x8xi1>, vector<8x8xf32>
    %cst_124 = arith.constant 0.000000e+00 : f32
    %252 = vector.broadcast %cst_124 : f32 to vector<8x8xf32>
    %253 = arith.cmpf oge, %251, %252 : vector<8x8xf32>
    %cst_125 = arith.constant 0.00999999977 : f32
    %254 = vector.broadcast %cst_125 : f32 to vector<8x8xf32>
    %255 = arith.mulf %254, %251 : vector<8x8xf32>
    %256 = arith.select %253, %251, %255 : vector<8x8xi1>, vector<8x8xf32>
    %257 = vector.extract_strided_slice %18 {offsets = [0, 0], sizes = [8, 8], strides = [1, 1]} : vector<16x8xf32> to vector<8x8xf32>
    %258 = arith.truncf %200 : vector<8x8xf32> to vector<8x8xbf16>
    %259 = arith.truncf %257 : vector<8x8xf32> to vector<8x8xbf16>
    %cst_126 = arith.constant dense<0.000000e+00> : vector<8x8xf32>
    %260 = tpu.matmul %258, %259, %cst_126 {dimension_numbers = #tpu.dot_dimension_numbers<[1], [0], [0], [1], [0, 0, 1, 1], [], []>} : vector<8x8xbf16>, vector<8x8xbf16>, vector<8x8xf32> -> vector<8x8xf32>
    %261 = vector.extract_strided_slice %18 {offsets = [8, 0], sizes = [8, 8], strides = [1, 1]} : vector<16x8xf32> to vector<8x8xf32>
    %262 = arith.truncf %256 : vector<8x8xf32> to vector<8x8xbf16>
    %263 = arith.truncf %261 : vector<8x8xf32> to vector<8x8xbf16>
    %cst_127 = arith.constant dense<0.000000e+00> : vector<8x8xf32>
    %264 = tpu.matmul %262, %263, %cst_127 {dimension_numbers = #tpu.dot_dimension_numbers<[1], [0], [0], [1], [0, 0, 1, 1], [], []>} : vector<8x8xbf16>, vector<8x8xbf16>, vector<8x8xf32> -> vector<8x8xf32>
    %265 = arith.addf %260, %264 : vector<8x8xf32>
    %266 = vector.extract_strided_slice %19 {offsets = [0, 0], sizes = [8, 8], strides = [1, 1]} : vector<16x8xf32> to vector<8x8xf32>
    %267 = arith.truncf %87 : vector<16x8xf32> to vector<16x8xbf16>
    %268 = arith.truncf %266 : vector<8x8xf32> to vector<8x8xbf16>
    %cst_128 = arith.constant dense<0.000000e+00> : vector<16x8xf32>
    %269 = tpu.matmul %267, %268, %cst_128 {dimension_numbers = #tpu.dot_dimension_numbers<[1], [0], [0], [1], [0, 0, 1, 1], [], []>} : vector<16x8xbf16>, vector<8x8xbf16>, vector<16x8xf32> -> vector<16x8xf32>
    %270 = vector.extract_strided_slice %19 {offsets = [8, 0], sizes = [8, 8], strides = [1, 1]} : vector<16x8xf32> to vector<8x8xf32>
    %271 = arith.truncf %143 : vector<16x8xf32> to vector<16x8xbf16>
    %272 = arith.truncf %270 : vector<8x8xf32> to vector<8x8xbf16>
    %cst_129 = arith.constant dense<0.000000e+00> : vector<16x8xf32>
    %273 = tpu.matmul %271, %272, %cst_129 {dimension_numbers = #tpu.dot_dimension_numbers<[1], [0], [0], [1], [0, 0, 1, 1], [], []>} : vector<16x8xbf16>, vector<8x8xbf16>, vector<16x8xf32> -> vector<16x8xf32>
    %274 = arith.addf %269, %273 : vector<16x8xf32>
    %275 = vector.broadcast %20 : vector<1x8xf32> to vector<16x8xf32>
    %276 = arith.mulf %274, %275 : vector<16x8xf32>
    %cst_130 = arith.constant dense<0.000000e+00> : vector<16xf32>
    %277 = vector.multi_reduction <add>, %276, %cst_130 [1] : vector<16x8xf32> to vector<16xf32>
    %278 = vector.shape_cast %277 : vector<16xf32> to vector<16x1xf32>
    %279 = arith.truncf %21 : vector<1x8xf32> to vector<1x8xbf16>
    %280 = arith.truncf %265 : vector<8x8xf32> to vector<8x8xbf16>
    %cst_131 = arith.constant dense<0.000000e+00> : vector<1x8xf32>
    %281 = tpu.matmul %279, %280, %cst_131 {dimension_numbers = #tpu.dot_dimension_numbers<[1], [1], [0], [0], [0, 0, 1, 0], [], []>} : vector<1x8xbf16>, vector<8x8xbf16>, vector<1x8xf32> -> vector<1x8xf32>
    %282 = vector.broadcast %278 : vector<16x1xf32> to vector<16x8xf32>
    %283 = vector.broadcast %281 : vector<1x8xf32> to vector<16x8xf32>
    %284 = arith.addf %282, %283 : vector<16x8xf32>
    %cst_132 = arith.constant 0.000000e+00 : f32
    %285 = vector.broadcast %cst_132 : f32 to vector<16x8xf32>
    %286 = arith.cmpf oge, %284, %285 : vector<16x8xf32>
    %cst_133 = arith.constant 0.00999999977 : f32
    %287 = vector.broadcast %cst_133 : f32 to vector<16x8xf32>
    %288 = arith.mulf %287, %284 : vector<16x8xf32>
    %289 = arith.select %286, %284, %288 : vector<16x8xi1>, vector<16x8xf32>
    %290 = math.exp %289 : vector<16x8xf32>
    %291 = arith.mulf %290, %4 : vector<16x8xf32>
    %cst_134 = arith.constant dense<0.000000e+00> : vector<16xf32>
    %292 = vector.multi_reduction <add>, %291, %cst_134 [1] : vector<16x8xf32> to vector<16xf32>
    %293 = vector.shape_cast %292 : vector<16xf32> to vector<16x1xf32>
    %294 = vector.broadcast %293 : vector<16x1xf32> to vector<16x8xf32>
    %295 = arith.divf %290, %294 : vector<16x8xf32>
    %296 = arith.mulf %295, %4 : vector<16x8xf32>
    %297 = arith.cmpf one, %296, %296 : vector<16x8xf32>
    %cst_135 = arith.constant 0.000000e+00 : f32
    %298 = vector.broadcast %cst_135 : f32 to vector<16x8xf32>
    %299 = arith.select %297, %298, %296 : vector<16x8xi1>, vector<16x8xf32>
    %cst_136 = arith.constant 0x7F800000 : f32
    %300 = vector.broadcast %cst_136 : f32 to vector<16x8xf32>
    %301 = arith.cmpf oeq, %299, %300 : vector<16x8xf32>
    %cst_137 = arith.constant 3.40282347E+38 : f32
    %302 = vector.broadcast %cst_137 : f32 to vector<16x8xf32>
    %303 = arith.select %301, %302, %299 : vector<16x8xi1>, vector<16x8xf32>
    %cst_138 = arith.constant 0xFF800000 : f32
    %304 = vector.broadcast %cst_138 : f32 to vector<16x8xf32>
    %305 = arith.cmpf oeq, %303, %304 : vector<16x8xf32>
    %cst_139 = arith.constant -3.40282347E+38 : f32
    %306 = vector.broadcast %cst_139 : f32 to vector<16x8xf32>
    %307 = arith.select %305, %306, %303 : vector<16x8xi1>, vector<16x8xf32>
    %308 = arith.truncf %307 : vector<16x8xf32> to vector<16x8xbf16>
    %309 = arith.truncf %265 : vector<8x8xf32> to vector<8x8xbf16>
    %cst_140 = arith.constant dense<0.000000e+00> : vector<16x8xf32>
    %310 = tpu.matmul %308, %309, %cst_140 {dimension_numbers = #tpu.dot_dimension_numbers<[1], [0], [0], [1], [0, 0, 1, 1], [], []>} : vector<16x8xbf16>, vector<8x8xbf16>, vector<16x8xf32> -> vector<16x8xf32>
    %cst_141 = arith.constant dense<0.000000e+00> : vector<16xf32>
    %311 = vector.multi_reduction <add>, %4, %cst_141 [1] : vector<16x8xf32> to vector<16xf32>
    %312 = vector.shape_cast %311 : vector<16xf32> to vector<16x1xf32>
    %313 = vector.broadcast %312 : vector<16x1xf32> to vector<16x8xf32>
    %314 = arith.divf %310, %313 : vector<16x8xf32>
    %315 = arith.cmpf one, %314, %314 : vector<16x8xf32>
    %cst_142 = arith.constant 0.000000e+00 : f32
    %316 = vector.broadcast %cst_142 : f32 to vector<16x8xf32>
    %317 = arith.select %315, %316, %314 : vector<16x8xi1>, vector<16x8xf32>
    %cst_143 = arith.constant 0x7F800000 : f32
    %318 = vector.broadcast %cst_143 : f32 to vector<16x8xf32>
    %319 = arith.cmpf oeq, %317, %318 : vector<16x8xf32>
    %cst_144 = arith.constant 3.40282347E+38 : f32
    %320 = vector.broadcast %cst_144 : f32 to vector<16x8xf32>
    %321 = arith.select %319, %320, %317 : vector<16x8xi1>, vector<16x8xf32>
    %cst_145 = arith.constant 0xFF800000 : f32
    %322 = vector.broadcast %cst_145 : f32 to vector<16x8xf32>
    %323 = arith.cmpf oeq, %321, %322 : vector<16x8xf32>
    %cst_146 = arith.constant -3.40282347E+38 : f32
    %324 = vector.broadcast %cst_146 : f32 to vector<16x8xf32>
    %325 = arith.select %323, %324, %321 : vector<16x8xi1>, vector<16x8xf32>
    %cst_147 = arith.constant 0.000000e+00 : f32
    %326 = vector.broadcast %cst_147 : f32 to vector<16x8xf32>
    %327 = arith.cmpf oge, %325, %326 : vector<16x8xf32>
    %cst_148 = arith.constant 0.00999999977 : f32
    %328 = vector.broadcast %cst_148 : f32 to vector<16x8xf32>
    %329 = arith.mulf %328, %325 : vector<16x8xf32>
    %330 = arith.select %327, %325, %329 : vector<16x8xi1>, vector<16x8xf32>
    %331 = vector.broadcast %22 : vector<1x8xf32> to vector<16x8xf32>
    %332 = arith.mulf %274, %331 : vector<16x8xf32>
    %cst_149 = arith.constant dense<0.000000e+00> : vector<16xf32>
    %333 = vector.multi_reduction <add>, %332, %cst_149 [1] : vector<16x8xf32> to vector<16xf32>
    %334 = vector.shape_cast %333 : vector<16xf32> to vector<16x1xf32>
    %335 = arith.truncf %23 : vector<1x8xf32> to vector<1x8xbf16>
    %336 = arith.truncf %274 : vector<16x8xf32> to vector<16x8xbf16>
    %cst_150 = arith.constant dense<0.000000e+00> : vector<1x16xf32>
    %337 = tpu.matmul %335, %336, %cst_150 {dimension_numbers = #tpu.dot_dimension_numbers<[1], [1], [0], [0], [0, 0, 1, 0], [], []>} : vector<1x8xbf16>, vector<16x8xbf16>, vector<1x16xf32> -> vector<1x16xf32>
    %338 = vector.broadcast %334 : vector<16x1xf32> to vector<16x16xf32>
    %339 = vector.broadcast %337 : vector<1x16xf32> to vector<16x16xf32>
    %340 = arith.addf %338, %339 : vector<16x16xf32>
    %cst_151 = arith.constant 0.000000e+00 : f32
    %341 = vector.broadcast %cst_151 : f32 to vector<16x16xf32>
    %342 = arith.cmpf oge, %340, %341 : vector<16x16xf32>
    %cst_152 = arith.constant 0.00999999977 : f32
    %343 = vector.broadcast %cst_152 : f32 to vector<16x16xf32>
    %344 = arith.mulf %343, %340 : vector<16x16xf32>
    %345 = arith.select %342, %340, %344 : vector<16x16xi1>, vector<16x16xf32>
    %346 = math.exp %345 : vector<16x16xf32>
    %347 = arith.mulf %346, %2 : vector<16x16xf32>
    %cst_153 = arith.constant dense<0.000000e+00> : vector<16xf32>
    %348 = vector.multi_reduction <add>, %347, %cst_153 [1] : vector<16x16xf32> to vector<16xf32>
    %349 = vector.shape_cast %348 : vector<16xf32> to vector<16x1xf32>
    %350 = vector.broadcast %349 : vector<16x1xf32> to vector<16x16xf32>
    %351 = arith.divf %346, %350 : vector<16x16xf32>
    %352 = arith.mulf %351, %2 : vector<16x16xf32>
    %353 = arith.cmpf one, %352, %352 : vector<16x16xf32>
    %cst_154 = arith.constant 0.000000e+00 : f32
    %354 = vector.broadcast %cst_154 : f32 to vector<16x16xf32>
    %355 = arith.select %353, %354, %352 : vector<16x16xi1>, vector<16x16xf32>
    %cst_155 = arith.constant 0x7F800000 : f32
    %356 = vector.broadcast %cst_155 : f32 to vector<16x16xf32>
    %357 = arith.cmpf oeq, %355, %356 : vector<16x16xf32>
    %cst_156 = arith.constant 3.40282347E+38 : f32
    %358 = vector.broadcast %cst_156 : f32 to vector<16x16xf32>
    %359 = arith.select %357, %358, %355 : vector<16x16xi1>, vector<16x16xf32>
    %cst_157 = arith.constant 0xFF800000 : f32
    %360 = vector.broadcast %cst_157 : f32 to vector<16x16xf32>
    %361 = arith.cmpf oeq, %359, %360 : vector<16x16xf32>
    %cst_158 = arith.constant -3.40282347E+38 : f32
    %362 = vector.broadcast %cst_158 : f32 to vector<16x16xf32>
    %363 = arith.select %361, %362, %359 : vector<16x16xi1>, vector<16x16xf32>
    %364 = arith.truncf %363 : vector<16x16xf32> to vector<16x16xbf16>
    %365 = arith.truncf %274 : vector<16x8xf32> to vector<16x8xbf16>
    %cst_159 = arith.constant dense<0.000000e+00> : vector<16x8xf32>
    %366 = tpu.matmul %364, %365, %cst_159 {dimension_numbers = #tpu.dot_dimension_numbers<[1], [0], [0], [1], [0, 0, 1, 1], [], []>} : vector<16x16xbf16>, vector<16x8xbf16>, vector<16x8xf32> -> vector<16x8xf32>
    %cst_160 = arith.constant dense<0.000000e+00> : vector<16xf32>
    %367 = vector.multi_reduction <add>, %2, %cst_160 [1] : vector<16x16xf32> to vector<16xf32>
    %368 = vector.shape_cast %367 : vector<16xf32> to vector<16x1xf32>
    %369 = vector.broadcast %368 : vector<16x1xf32> to vector<16x8xf32>
    %370 = arith.divf %366, %369 : vector<16x8xf32>
    %371 = arith.cmpf one, %370, %370 : vector<16x8xf32>
    %cst_161 = arith.constant 0.000000e+00 : f32
    %372 = vector.broadcast %cst_161 : f32 to vector<16x8xf32>
    %373 = arith.select %371, %372, %370 : vector<16x8xi1>, vector<16x8xf32>
    %cst_162 = arith.constant 0x7F800000 : f32
    %374 = vector.broadcast %cst_162 : f32 to vector<16x8xf32>
    %375 = arith.cmpf oeq, %373, %374 : vector<16x8xf32>
    %cst_163 = arith.constant 3.40282347E+38 : f32
    %376 = vector.broadcast %cst_163 : f32 to vector<16x8xf32>
    %377 = arith.select %375, %376, %373 : vector<16x8xi1>, vector<16x8xf32>
    %cst_164 = arith.constant 0xFF800000 : f32
    %378 = vector.broadcast %cst_164 : f32 to vector<16x8xf32>
    %379 = arith.cmpf oeq, %377, %378 : vector<16x8xf32>
    %cst_165 = arith.constant -3.40282347E+38 : f32
    %380 = vector.broadcast %cst_165 : f32 to vector<16x8xf32>
    %381 = arith.select %379, %380, %377 : vector<16x8xi1>, vector<16x8xf32>
    %cst_166 = arith.constant 0.000000e+00 : f32
    %382 = vector.broadcast %cst_166 : f32 to vector<16x8xf32>
    %383 = arith.cmpf oge, %381, %382 : vector<16x8xf32>
    %cst_167 = arith.constant 0.00999999977 : f32
    %384 = vector.broadcast %cst_167 : f32 to vector<16x8xf32>
    %385 = arith.mulf %384, %381 : vector<16x8xf32>
    %386 = arith.select %383, %381, %385 : vector<16x8xi1>, vector<16x8xf32>
    %387 = vector.extract_strided_slice %24 {offsets = [0, 0], sizes = [8, 4], strides = [1, 1]} : vector<16x4xf32> to vector<8x4xf32>
    %388 = arith.truncf %330 : vector<16x8xf32> to vector<16x8xbf16>
    %389 = arith.truncf %387 : vector<8x4xf32> to vector<8x4xbf16>
    %cst_168 = arith.constant dense<0.000000e+00> : vector<16x4xf32>
    %390 = tpu.matmul %388, %389, %cst_168 {dimension_numbers = #tpu.dot_dimension_numbers<[1], [0], [0], [1], [0, 0, 1, 1], [], []>} : vector<16x8xbf16>, vector<8x4xbf16>, vector<16x4xf32> -> vector<16x4xf32>
    %391 = vector.extract_strided_slice %24 {offsets = [8, 0], sizes = [8, 4], strides = [1, 1]} : vector<16x4xf32> to vector<8x4xf32>
    %392 = arith.truncf %386 : vector<16x8xf32> to vector<16x8xbf16>
    %393 = arith.truncf %391 : vector<8x4xf32> to vector<8x4xbf16>
    %cst_169 = arith.constant dense<0.000000e+00> : vector<16x4xf32>
    %394 = tpu.matmul %392, %393, %cst_169 {dimension_numbers = #tpu.dot_dimension_numbers<[1], [0], [0], [1], [0, 0, 1, 1], [], []>} : vector<16x8xbf16>, vector<8x4xbf16>, vector<16x4xf32> -> vector<16x4xf32>
    %395 = arith.addf %390, %394 : vector<16x4xf32>
    %396 = vector.broadcast %25 : vector<1x4xf32> to vector<16x4xf32>
    %397 = arith.addf %395, %396 : vector<16x4xf32>
    %cst_170 = arith.constant dense<0xFF800000> : vector<16xf32>
    %398 = vector.multi_reduction <maximumf>, %397, %cst_170 [1] : vector<16x4xf32> to vector<16xf32>
    %399 = vector.shape_cast %398 : vector<16xf32> to vector<16x1xf32>
    %400 = vector.broadcast %399 : vector<16x1xf32> to vector<16x4xf32>
    %401 = arith.subf %397, %400 : vector<16x4xf32>
    %402 = math.exp %401 : vector<16x4xf32>
    %cst_171 = arith.constant dense<0.000000e+00> : vector<16xf32>
    %403 = vector.multi_reduction <add>, %402, %cst_171 [1] : vector<16x4xf32> to vector<16xf32>
    %404 = vector.shape_cast %403 : vector<16xf32> to vector<16x1xf32>
    %405 = vector.broadcast %404 : vector<16x1xf32> to vector<16x4xf32>
    %406 = arith.divf %402, %405 : vector<16x4xf32>
    %c0_172 = arith.constant 0 : index
    %c0_173 = arith.constant 0 : index
    %407 = vector.load %arg26[%c0_172, %c0_173] : memref<16x4xf32, #tpu.memory_space<vmem>>, vector<16x4xf32>
    tpu.vector_store %arg26[%c0_172, %c0_173], %406 {strides = array<i32>} : memref<16x4xf32, #tpu.memory_space<vmem>>, vector<16x4xf32>,
    %c0_174 = arith.constant 0 : index
    %c0_175 = arith.constant 0 : index
    %408 = vector.load %arg27[%c0_174, %c0_175] : memref<16x8xf32, #tpu.memory_space<vmem>>, vector<16x8xf32>
    tpu.vector_store %arg27[%c0_174, %c0_175], %330 {strides = array<i32>} : memref<16x8xf32, #tpu.memory_space<vmem>>, vector<16x8xf32>,
    %c0_176 = arith.constant 0 : index
    %c0_177 = arith.constant 0 : index
    %409 = vector.load %arg28[%c0_176, %c0_177] : memref<16x8xf32, #tpu.memory_space<vmem>>, vector<16x8xf32>
    tpu.vector_store %arg28[%c0_176, %c0_177], %386 {strides = array<i32>} : memref<16x8xf32, #tpu.memory_space<vmem>>, vector<16x8xf32>,
    return
  }
}

</mosaic_0001>

<llo_original>
// kernel: nenn_forward.1
$region0: #{nenn_forward.1}
  #allocation0 [shape = 'u32[]', space=smem, size = 0x4, offset = 0x4, fixed_abs, tag = 'smem constant byte address 0x4 - core index']
  #allocation1 [shape = 'u32[144,128]{1,0:T(1,128)}', space=vmem, size = 0x12000, scoped, tag = 'internal scratch']
  %s0 = inlined_call_operand.vmem [shape: f32[8,8], index: 0, kind: input, shape index: {}]
  %s1 = inlined_call_operand.vmem [shape: f32[16,8], index: 1, kind: input, shape index: {}]
  %s2 = inlined_call_operand.vmem [shape: f32[16,16], index: 2, kind: input, shape index: {}]
  %s3 = inlined_call_operand.vmem [shape: f32[8,16], index: 3, kind: input, shape index: {}]
  %s4 = inlined_call_operand.vmem [shape: f32[16,8], index: 4, kind: input, shape index: {}]
  %s5 = inlined_call_operand.vmem [shape: f32[8,8], index: 5, kind: input, shape index: {}]
  %s6 = inlined_call_operand.vmem [shape: f32[8,8], index: 6, kind: input, shape index: {}]
  %s7 = inlined_call_operand.vmem [shape: f32[8,8], index: 7, kind: input, shape index: {}]
  %s8 = inlined_call_operand.vmem [shape: f32[1,8], index: 8, kind: input, shape index: {}]
  %s9 = inlined_call_operand.vmem [shape: f32[1,8], index: 9, kind: input, shape index: {}]
  %s10 = inlined_call_operand.vmem [shape: f32[1,8], index: 10, kind: input, shape index: {}]
  %s11 = inlined_call_operand.vmem [shape: f32[1,8], index: 11, kind: input, shape index: {}]
  %s12 = inlined_call_operand.vmem [shape: f32[8,8], index: 12, kind: input, shape index: {}]
  %s13 = inlined_call_operand.vmem [shape: f32[16,8], index: 13, kind: input, shape index: {}]
  %s14 = inlined_call_operand.vmem [shape: f32[1,8], index: 14, kind: input, shape index: {}]
  %s15 = inlined_call_operand.vmem [shape: f32[1,8], index: 15, kind: input, shape index: {}]
  %s16 = inlined_call_operand.vmem [shape: f32[1,8], index: 16, kind: input, shape index: {}]
  %s17 = inlined_call_operand.vmem [shape: f32[1,8], index: 17, kind: input, shape index: {}]
  %s18 = inlined_call_operand.vmem [shape: f32[16,8], index: 18, kind: input, shape index: {}]
  %s19 = inlined_call_operand.vmem [shape: f32[16,8], index: 19, kind: input, shape index: {}]
  %s20 = inlined_call_operand.vmem [shape: f32[1,8], index: 20, kind: input, shape index: {}]
  %s21 = inlined_call_operand.vmem [shape: f32[1,8], index: 21, kind: input, shape index: {}]
  %s22 = inlined_call_operand.vmem [shape: f32[1,8], index: 22, kind: input, shape index: {}]
  %s23 = inlined_call_operand.vmem [shape: f32[1,8], index: 23, kind: input, shape index: {}]
  %s24 = inlined_call_operand.vmem [shape: f32[16,4], index: 24, kind: input, shape index: {}]
  %s25 = inlined_call_operand.vmem [shape: f32[1,4], index: 25, kind: input, shape index: {}]
  %s26 = inlined_call_operand.vmem [shape: f32[16,4], index: 26, kind: output, shape index: {0}]
  %s27 = inlined_call_operand.vmem [shape: f32[16,8], index: 27, kind: output, shape index: {1}]
  %s28 = inlined_call_operand.vmem [shape: f32[16,8], index: 28, kind: output, shape index: {2}]
  %29 = xla_tuple %s26, %s27, %s28
  %s30 = sld [smem:[#allocation0]]
  $region130: #{nenn_forward.1} parent=0
    _
  %s32 = ssub.s32 1, %s30
  %s33 = scalar_select 0, %s32, %s30
  // Predicated region
  $region2: #{nenn_forward.1} parent=0 // pred_check
    _
  $region3: #{nenn_forward.1} parent=0 // pred_check_branch
    %35 = sbr.rel (0) target = $region5
  $region4: #{nenn_forward.1} parent=0 // pred_region
    _
  $region5: #{nenn_forward.1} parent=0 // pred_fallthru
    _
  // Predicated region
  $region6: #{nenn_forward.1} parent=0 // pred_check
    _
  $region7: #{nenn_forward.1} parent=0 // pred_check_branch
    %37 = sbr.rel (0) target = $region9
  $region8: #{nenn_forward.1} parent=0 // pred_region
    _
  $region9: #{nenn_forward.1} parent=0 // pred_fallthru
    _
  // Predicated region
  $region10: #{nenn_forward.1} parent=0 // pred_check
    _
  $region11: #{nenn_forward.1} parent=0 // pred_check_branch
    %39 = sbr.rel (0) target = $region13
  $region12: #{nenn_forward.1} parent=0 // pred_region
    _
  $region13: #{nenn_forward.1} parent=0 // pred_fallthru
    _
  // Predicated region
  $region14: #{nenn_forward.1} parent=0 // pred_check
    _
  $region15: #{nenn_forward.1} parent=0 // pred_check_branch
    %41 = sbr.rel (0) target = $region17
  $region16: #{nenn_forward.1} parent=0 // pred_region
    _
  $region17: #{nenn_forward.1} parent=0 // pred_fallthru
    _
  // Predicated region
  $region18: #{nenn_forward.1} parent=0 // pred_check
    _
  $region19: #{nenn_forward.1} parent=0 // pred_check_branch
    %43 = sbr.rel (0) target = $region21
  $region20: #{nenn_forward.1} parent=0 // pred_region
    _
  $region21: #{nenn_forward.1} parent=0 // pred_fallthru
    _
  // Predicated region
  $region22: #{nenn_forward.1} parent=0 // pred_check
    _
  $region23: #{nenn_forward.1} parent=0 // pred_check_branch
    %45 = sbr.rel (0) target = $region25
  $region24: #{nenn_forward.1} parent=0 // pred_region
    _
  $region25: #{nenn_forward.1} parent=0 // pred_fallthru
    _
  // Predicated region
  $region26: #{nenn_forward.1} parent=0 // pred_check
    _
  $region27: #{nenn_forward.1} parent=0 // pred_check_branch
    %47 = sbr.rel (0) target = $region29
  $region28: #{nenn_forward.1} parent=0 // pred_region
    _
  $region29: #{nenn_forward.1} parent=0 // pred_fallthru
    _
  // Predicated region
  $region30: #{nenn_forward.1} parent=0 // pred_check
    _
  $region31: #{nenn_forward.1} parent=0 // pred_check_branch
    %49 = sbr.rel (0) target = $region33
  $region32: #{nenn_forward.1} parent=0 // pred_region
    _
  $region33: #{nenn_forward.1} parent=0 // pred_fallthru
    _
  // Predicated region
  $region34: #{nenn_forward.1} parent=0 // pred_check
    _
  $region35: #{nenn_forward.1} parent=0 // pred_check_branch
    %51 = sbr.rel (0) target = $region37
  $region36: #{nenn_forward.1} parent=0 // pred_region
    _
  $region37: #{nenn_forward.1} parent=0 // pred_fallthru
    _
  // Predicated region
  $region38: #{nenn_forward.1} parent=0 // pred_check
    _
  $region39: #{nenn_forward.1} parent=0 // pred_check_branch
    %53 = sbr.rel (0) target = $region41
  $region40: #{nenn_forward.1} parent=0 // pred_region
    _
  $region41: #{nenn_forward.1} parent=0 // pred_fallthru
    _
  // Predicated region
  $region42: #{nenn_forward.1} parent=0 // pred_check
    _
  $region43: #{nenn_forward.1} parent=0 // pred_check_branch
    %55 = sbr.rel (0) target = $region45
  $region44: #{nenn_forward.1} parent=0 // pred_region
    _
  $region45: #{nenn_forward.1} parent=0 // pred_fallthru
    _
  // Predicated region
  $region46: #{nenn_forward.1} parent=0 // pred_check
    _
  $region47: #{nenn_forward.1} parent=0 // pred_check_branch
    %57 = sbr.rel (0) target = $region49
  $region48: #{nenn_forward.1} parent=0 // pred_region
    _
  $region49: #{nenn_forward.1} parent=0 // pred_fallthru
    _
  // Predicated region
  $region50: #{nenn_forward.1} parent=0 // pred_check
    _
  $region51: #{nenn_forward.1} parent=0 // pred_check_branch
    %59 = sbr.rel (0) target = $region53
  $region52: #{nenn_forward.1} parent=0 // pred_region
    _
  $region53: #{nenn_forward.1} parent=0 // pred_fallthru
    _
  // Predicated region
  $region54: #{nenn_forward.1} parent=0 // pred_check
    _
  $region55: #{nenn_forward.1} parent=0 // pred_check_branch
    %61 = sbr.rel (0) target = $region57
  $region56: #{nenn_forward.1} parent=0 // pred_region
    _
  $region57: #{nenn_forward.1} parent=0 // pred_fallthru
    _
  // Predicated region
  $region58: #{nenn_forward.1} parent=0 // pred_check
    _
  $region59: #{nenn_forward.1} parent=0 // pred_check_branch
    %63 = sbr.rel (0) target = $region61
  $region60: #{nenn_forward.1} parent=0 // pred_region
    _
  $region61: #{nenn_forward.1} parent=0 // pred_fallthru
    _
  // Predicated region
  $region62: #{nenn_forward.1} parent=0 // pred_check
    _
  $region63: #{nenn_forward.1} parent=0 // pred_check_branch
    %65 = sbr.rel (0) target = $region65
  $region64: #{nenn_forward.1} parent=0 // pred_region
    _
  $region65: #{nenn_forward.1} parent=0 // pred_fallthru
    _
  // Predicated region
  $region66: #{nenn_forward.1} parent=0 // pred_check
    _
  $region67: #{nenn_forward.1} parent=0 // pred_check_branch
    %67 = sbr.rel (0) target = $region69
  $region68: #{nenn_forward.1} parent=0 // pred_region
    _
  $region69: #{nenn_forward.1} parent=0 // pred_fallthru
    _
  // Predicated region
  $region70: #{nenn_forward.1} parent=0 // pred_check
    _
  $region71: #{nenn_forward.1} parent=0 // pred_check_branch
    %69 = sbr.rel (0) target = $region73
  $region72: #{nenn_forward.1} parent=0 // pred_region
    _
  $region73: #{nenn_forward.1} parent=0 // pred_fallthru
    _
  // Predicated region
  $region74: #{nenn_forward.1} parent=0 // pred_check
    _
  $region75: #{nenn_forward.1} parent=0 // pred_check_branch
    %71 = sbr.rel (0) target = $region77
  $region76: #{nenn_forward.1} parent=0 // pred_region
    _
  $region77: #{nenn_forward.1} parent=0 // pred_fallthru
    _
  // Predicated region
  $region78: #{nenn_forward.1} parent=0 // pred_check
    _
  $region79: #{nenn_forward.1} parent=0 // pred_check_branch
    %73 = sbr.rel (0) target = $region81
  $region80: #{nenn_forward.1} parent=0 // pred_region
    _
  $region81: #{nenn_forward.1} parent=0 // pred_fallthru
    _
  // Predicated region
  $region82: #{nenn_forward.1} parent=0 // pred_check
    _
  $region83: #{nenn_forward.1} parent=0 // pred_check_branch
    %75 = sbr.rel (0) target = $region85
  $region84: #{nenn_forward.1} parent=0 // pred_region
    _
  $region85: #{nenn_forward.1} parent=0 // pred_fallthru
    _
  // Predicated region
  $region86: #{nenn_forward.1} parent=0 // pred_check
    _
  $region87: #{nenn_forward.1} parent=0 // pred_check_branch
    %77 = sbr.rel (0) target = $region89
  $region88: #{nenn_forward.1} parent=0 // pred_region
    _
  $region89: #{nenn_forward.1} parent=0 // pred_fallthru
    _
  // Predicated region
  $region90: #{nenn_forward.1} parent=0 // pred_check
    _
  $region91: #{nenn_forward.1} parent=0 // pred_check_branch
    %79 = sbr.rel (0) target = $region93
  $region92: #{nenn_forward.1} parent=0 // pred_region
    _
  $region93: #{nenn_forward.1} parent=0 // pred_fallthru
    _
  // Predicated region
  $region94: #{nenn_forward.1} parent=0 // pred_check
    _
  $region95: #{nenn_forward.1} parent=0 // pred_check_branch
    %81 = sbr.rel (0) target = $region97
  $region96: #{nenn_forward.1} parent=0 // pred_region
    _
  $region97: #{nenn_forward.1} parent=0 // pred_fallthru
    _
  // Predicated region
  $region98: #{nenn_forward.1} parent=0 // pred_check
    _
  $region99: #{nenn_forward.1} parent=0 // pred_check_branch
    %83 = sbr.rel (0) target = $region101
  $region100: #{nenn_forward.1} parent=0 // pred_region
    _
  $region101: #{nenn_forward.1} parent=0 // pred_fallthru
    _
  // Predicated region
  $region102: #{nenn_forward.1} parent=0 // pred_check
    _
  $region103: #{nenn_forward.1} parent=0 // pred_check_branch
    %85 = sbr.rel (0) target = $region105
  $region104: #{nenn_forward.1} parent=0 // pred_region
    _
  $region105: #{nenn_forward.1} parent=0 // pred_fallthru
    _
  %v87 = vld [vmem:[%s0] sm:$0xff]
  %v88 = vld [vmem:[%s1] sm:$0xff]
  %v89 = vld [vmem:[%s1 + $0x8] sm:$0xff]
  %v90 = vld [vmem:[%s2] sm:$0xff]
  %v91 = vld [vmem:[%s2 + $0x8] sm:$0xff]
  %v92 = vld [vmem:[%s3] sm:$0xff]
  %v93 = vld [vmem:[%s4] sm:$0xff]
  %v94 = vld [vmem:[%s4 + $0x8] sm:$0xff]
  %v95 = vld [vmem:[%s5] sm:$0xff]
  %v96 = vld [vmem:[%s6] sm:$0xff]
  %v97 = vld [vmem:[%s7] sm:$0xff]
  %v98 = vld [vmem:[%s8] sm:$0x1]
  %v99 = vld [vmem:[%s9] sm:$0x1]
  %v100 = vld [vmem:[%s10] sm:$0x1]
  %v101 = vld [vmem:[%s11] sm:$0x1]
  %v102 = vld [vmem:[%s12] sm:$0xff]
  %v103 = vld [vmem:[%s13] sm:$0xff]
  %v104 = vld [vmem:[%s13 + $0x8] sm:$0xff]
  %v105 = vld [vmem:[%s14] sm:$0x1]
  %v106 = vld [vmem:[%s15] sm:$0x1]
  %v107 = vld [vmem:[%s16] sm:$0x1]
  %v108 = vld [vmem:[%s17] sm:$0x1]
  %v109 = vld [vmem:[%s18] sm:$0xff]
  %v110 = vld [vmem:[%s18 + $0x8] sm:$0xff]
  %v111 = vld [vmem:[%s19] sm:$0xff]
  %v112 = vld [vmem:[%s19 + $0x8] sm:$0xff]
  %v113 = vld [vmem:[%s20] sm:$0x1]
  %v114 = vld [vmem:[%s21] sm:$0x1]
  %v115 = vld [vmem:[%s22] sm:$0x1]
  %v116 = vld [vmem:[%s23] sm:$0x1]
  %v117 = vld [vmem:[%s24] sm:$0xff]
  %v118 = vld [vmem:[%s24 + $0x8] sm:$0xff]
  %v119 = vld [vmem:[%s25] sm:$0x1]
  %v120 = vpack.c.bf16 %v87, %v87
  %v121 = vpack.c.bf16 %v96, %v96
  %vm122 = vcmask 64512
  %v124 = vsel %vm122, %v120, 0
  %vm126 = vcmask 1043456
  %v128 = vsel %vm126, %v121, 0
  %130 = vmatprep.subr.bf16.mxu0 0
  %131 = vmatpush1.bf16.msra.mxu0 %v128
  %132 = vmatprep.subr.bf16.mxu0 0
  %133 = vmatpush1.bf16.msra.mxu0 0
  %134 = vmatprep.subr.bf16.mxu0 0
  %135 = vmatpush1.bf16.msra.mxu0 0
  %136 = vmatprep.subr.bf16.mxu0 0
  %137 = vmatpush1.bf16.msra.mxu0 0
  %138 = vmatprep.subr.bf16.mxu0 0
  %139 = vmatpush1.bf16.msra.mxu0 0
  %140 = vmatprep.subr.bf16.mxu0 0
  %141 = vmatpush1.bf16.msra.mxu0 0
  %142 = vmatprep.subr.bf16.mxu0 0
  %143 = vmatpush1.bf16.msra.mxu0 0
  %144 = vmatprep.subr.bf16.mxu0 0
  %145 = vmatpush1.bf16.msra.mxu0 0
  %146 = vmatprep.subr.bf16.mxu0 0
  %147 = vmatpush1.bf16.msra.mxu0 0
  %148 = vmatprep.subr.bf16.mxu0 0
  %149 = vmatpush1.bf16.msra.mxu0 0
  %150 = vmatprep.subr.bf16.mxu0 0
  %151 = vmatpush1.bf16.msra.mxu0 0
  %152 = vmatprep.subr.bf16.mxu0 0
  %153 = vmatpush1.bf16.msra.mxu0 0
  %154 = vmatprep.subr.bf16.mxu0 0
  %155 = vmatpush1.bf16.msra.mxu0 0
  %156 = vmatprep.subr.bf16.mxu0 0
  %157 = vmatpush1.bf16.msra.mxu0 0
  %158 = vmatprep.subr.bf16.mxu0 0
  %159 = vmatpush1.bf16.msra.mxu0 0
  %160 = vmatprep.subr.bf16.mxu0 0
  %161 = vmatpush1.bf16.msra.mxu0 0
  %162 = vmatprep.mubr.bf16.mxu0 0
  %163 = vmatmul.mubr.bf16.gmra.mrb[0].mxu0 %v124
  %v164 = vpop.f32.mrb[0].mxu0
  %v165 = vadd.f32 0.0, %v164
  %v166 = vpop.f32.mrb[0].mxu0
  %v167 = vpop.f32.mrb[0].mxu0
  %v168 = vpop.f32.mrb[0].mxu0
  %169 = vdwg.mxu0
  %v170 = vpack.c.bf16 %v89, %v88
  %v171 = vpack.c.bf16 %v97, %v97
  %v173 = vsel %vm122, %v170, 0
  %v176 = vsel %vm126, %v171, 0
  %178 = vmatprep.subr.bf16.mxu0 0
  %179 = vmatpush1.bf16.msra.mxu0 %v176
  %180 = vmatprep.subr.bf16.mxu0 0
  %181 = vmatpush1.bf16.msra.mxu0 0
  %182 = vmatprep.subr.bf16.mxu0 0
  %183 = vmatpush1.bf16.msra.mxu0 0
  %184 = vmatprep.subr.bf16.mxu0 0
  %185 = vmatpush1.bf16.msra.mxu0 0
  %186 = vmatprep.subr.bf16.mxu0 0
  %187 = vmatpush1.bf16.msra.mxu0 0
  %188 = vmatprep.subr.bf16.mxu0 0
  %189 = vmatpush1.bf16.msra.mxu0 0
  %190 = vmatprep.subr.bf16.mxu0 0
  %191 = vmatpush1.bf16.msra.mxu0 0
  %192 = vmatprep.subr.bf16.mxu0 0
  %193 = vmatpush1.bf16.msra.mxu0 0
  %194 = vmatprep.subr.bf16.mxu0 0
  %195 = vmatpush1.bf16.msra.mxu0 0
  %196 = vmatprep.subr.bf16.mxu0 0
  %197 = vmatpush1.bf16.msra.mxu0 0
  %198 = vmatprep.subr.bf16.mxu0 0
  %199 = vmatpush1.bf16.msra.mxu0 0
  %200 = vmatprep.subr.bf16.mxu0 0
  %201 = vmatpush1.bf16.msra.mxu0 0
  %202 = vmatprep.subr.bf16.mxu0 0
  %203 = vmatpush1.bf16.msra.mxu0 0
  %204 = vmatprep.subr.bf16.mxu0 0
  %205 = vmatpush1.bf16.msra.mxu0 0
  %206 = vmatprep.subr.bf16.mxu0 0
  %207 = vmatpush1.bf16.msra.mxu0 0
  %208 = vmatprep.subr.bf16.mxu0 0
  %209 = vmatpush1.bf16.msra.mxu0 0
  %210 = vmatprep.mubr.bf16.mxu0 0
  %211 = vmatmul.mubr.bf16.gmra.mrb[0].mxu0 %v173
  %v212 = vpop.f32.mrb[0].mxu0
  %v213 = vadd.f32 0.0, %v212
  %v214 = vpop.f32.mrb[0].mxu0
  %v215 = vpop.f32.mrb[0].mxu0
  %v216 = vadd.f32 0.0, %v215
  %v217 = vpop.f32.mrb[0].mxu0
  %218 = vdwg.mxu0
  %v220 = vlaneseq
  %v221 = vshrl.u32 %v220, 7
  %v222 = vsub.s32 0, %v221
  %v223 = vrot.slane %v98, %v222
  %v225 = vmul.f32 %v213, %v223
  %v226 = vmul.f32 %v216, %v223
  %v227 = vsel %vm122, %v225, 0.0
  %228 = vadd.xlane.f32.xlu0 %v227
  %v229 = vpop.xlane.xlu0 %228
  %v230 = vsel %vm122, %v226, 0.0
  %231 = vadd.xlane.f32.xlu0 %v230
  %v232 = vpop.xlane.xlu0 %231
  %v233 = vpack.c.bf16 %v99, %v99
  %v234 = vpack.c.bf16 %v165, %v165
  %v236 = vsel %vm122, %v233, 0
  %v239 = vsel %vm122, %v234, 0
  %241 = vmatprep.subr.bf16.mxu0 0
  %242 = vmatpush1.bf16.xpose.msra.mxu0 %v239
  %243 = vmatprep.subr.bf16.mxu0 0
  %244 = vmatpush1.bf16.xpose.msra.mxu0 0
  %245 = vmatprep.subr.bf16.mxu0 0
  %246 = vmatpush1.bf16.xpose.msra.mxu0 0
  %247 = vmatprep.subr.bf16.mxu0 0
  %248 = vmatpush1.bf16.xpose.msra.mxu0 0
  %249 = vmatprep.subr.bf16.mxu0 0
  %250 = vmatpush1.bf16.xpose.msra.mxu0 0
  %251 = vmatprep.subr.bf16.mxu0 0
  %252 = vmatpush1.bf16.xpose.msra.mxu0 0
  %253 = vmatprep.subr.bf16.mxu0 0
  %254 = vmatpush1.bf16.xpose.msra.mxu0 0
  %255 = vmatprep.subr.bf16.mxu0 0
  %256 = vmatpush1.bf16.xpose.msra.mxu0 0
  %257 = vmatprep.subr.bf16.mxu0 0
  %258 = vmatpush1.bf16.xpose.msra.mxu0 0
  %259 = vmatprep.subr.bf16.mxu0 0
  %260 = vmatpush1.bf16.xpose.msra.mxu0 0
  %261 = vmatprep.subr.bf16.mxu0 0
  %262 = vmatpush1.bf16.xpose.msra.mxu0 0
  %263 = vmatprep.subr.bf16.mxu0 0
  %264 = vmatpush1.bf16.xpose.msra.mxu0 0
  %265 = vmatprep.subr.bf16.mxu0 0
  %266 = vmatpush1.bf16.xpose.msra.mxu0 0
  %267 = vmatprep.subr.bf16.mxu0 0
  %268 = vmatpush1.bf16.xpose.msra.mxu0 0
  %269 = vmatprep.subr.bf16.mxu0 0
  %270 = vmatpush1.bf16.xpose.msra.mxu0 0
  %271 = vmatprep.subr.bf16.mxu0 0
  %272 = vmatpush1.bf16.xpose.msra.mxu0 0
  %273 = vmatprep.mubr.bf16.mxu0 0
  %274 = vmatmul.mubr.bf16.gmra.mrb[0].mxu0 %v236
  %v275 = vpop.f32.mrb[0].mxu0
  %v276 = vadd.f32 0.0, %v275
  %v277 = vpop.f32.mrb[0].mxu0
  %v278 = vpop.f32.mrb[0].mxu0
  %v279 = vpop.f32.mrb[0].mxu0
  %280 = vdwg.mxu0
  %v281 = vlaneseq
  %v282 = vshrl.u32 %v281, 7
  %v283 = vsub.s32 0, %v282
  %v284 = vrot.slane %v276, %v283
  %v285 = vadd.f32 %v229, %v284
  %v286 = vadd.f32 %v232, %v284
  %vm287 = vcmp.ge.f32.partialorder %v285, 0.0
  %vm288 = vcmp.ge.f32.partialorder %v286, 0.0
  %v289 = vmul.f32 %v285, 0.01
  %v290 = vmul.f32 %v286, 0.01
  %v291 = vsel %vm287, %v285, %v289
  %v292 = vsel %vm288, %v286, %v290
  %v293 = vmul.f32 %v291, 1.442695
  %v294 = vpow.pop %v293
  %v295 = vmul.f32 %v292, 1.442695
  %v296 = vpow.pop %v295
  %v297 = vmul.f32 %v294, %v93
  %v298 = vmul.f32 %v296, %v94
  %v299 = vsel %vm122, %v297, 0.0
  %300 = vadd.xlane.f32.xlu0 %v299
  %v301 = vpop.xlane.xlu0 %300
  %v302 = vsel %vm122, %v298, 0.0
  %303 = vadd.xlane.f32.xlu0 %v302
  %v304 = vpop.xlane.xlu0 %303
  %v305 = vrcp.pop %v301
  %v306 = vmul.f32 %v294, %v305
  %v307 = vrcp.pop %v304
  %v308 = vmul.f32 %v296, %v307
  %v309 = vmul.f32 %v306, %v93
  %v310 = vmul.f32 %v308, %v94
  %vm311 = vcmp.ne.f32.partialorder %v309, %v309
  %vm312 = vcmp.ne.f32.partialorder %v310, %v310
  %v313 = vsel %vm311, 0.0, %v309
  %v314 = vsel %vm312, 0.0, %v310
  %vm315 = vcmp.eq.f32.partialorder %v313, inf
  %vm316 = vcmp.eq.f32.partialorder %v314, inf
  %v317 = vsel %vm315, 3.4028235e+38, %v313
  %v318 = vsel %vm316, 3.4028235e+38, %v314
  %vm319 = vcmp.eq.f32.partialorder %v317, -inf
  %vm320 = vcmp.eq.f32.partialorder %v318, -inf
  %v321 = vsel %vm319, -3.4028235e+38, %v317
  %v322 = vsel %vm320, -3.4028235e+38, %v318
  %v323 = vpack.c.bf16 %v322, %v321
  %v325 = vsel %vm122, %v323, 0
  %v327 = vsel %vm126, %v234, 0
  %329 = vmatprep.subr.bf16.mxu0 0
  %330 = vmatpush1.bf16.msra.mxu0 %v327
  %331 = vmatprep.subr.bf16.mxu0 0
  %332 = vmatpush1.bf16.msra.mxu0 0
  %333 = vmatprep.subr.bf16.mxu0 0
  %334 = vmatpush1.bf16.msra.mxu0 0
  %335 = vmatprep.subr.bf16.mxu0 0
  %336 = vmatpush1.bf16.msra.mxu0 0
  %337 = vmatprep.subr.bf16.mxu0 0
  %338 = vmatpush1.bf16.msra.mxu0 0
  %339 = vmatprep.subr.bf16.mxu0 0
  %340 = vmatpush1.bf16.msra.mxu0 0
  %341 = vmatprep.subr.bf16.mxu0 0
  %342 = vmatpush1.bf16.msra.mxu0 0
  %343 = vmatprep.subr.bf16.mxu0 0
  %344 = vmatpush1.bf16.msra.mxu0 0
  %345 = vmatprep.subr.bf16.mxu0 0
  %346 = vmatpush1.bf16.msra.mxu0 0
  %347 = vmatprep.subr.bf16.mxu0 0
  %348 = vmatpush1.bf16.msra.mxu0 0
  %349 = vmatprep.subr.bf16.mxu0 0
  %350 = vmatpush1.bf16.msra.mxu0 0
  %351 = vmatprep.subr.bf16.mxu0 0
  %352 = vmatpush1.bf16.msra.mxu0 0
  %353 = vmatprep.subr.bf16.mxu0 0
  %354 = vmatpush1.bf16.msra.mxu0 0
  %355 = vmatprep.subr.bf16.mxu0 0
  %356 = vmatpush1.bf16.msra.mxu0 0
  %357 = vmatprep.subr.bf16.mxu0 0
  %358 = vmatpush1.bf16.msra.mxu0 0
  %359 = vmatprep.subr.bf16.mxu0 0
  %360 = vmatpush1.bf16.msra.mxu0 0
  %361 = vmatprep.mubr.bf16.mxu0 0
  %362 = vmatmul.mubr.bf16.gmra.mrb[0].mxu0 %v325
  %v363 = vpop.f32.mrb[0].mxu0
  %v364 = vadd.f32 0.0, %v363
  %v365 = vpop.f32.mrb[0].mxu0
  %v366 = vpop.f32.mrb[0].mxu0
  %v367 = vadd.f32 0.0, %v366
  %v368 = vpop.f32.mrb[0].mxu0
  %369 = vdwg.mxu0
  %v370 = vsel %vm122, %v93, 0.0
  %371 = vadd.xlane.f32.xlu0 %v370
  %v372 = vpop.xlane.xlu0 %371
  %v373 = vsel %vm122, %v94, 0.0
  %374 = vadd.xlane.f32.xlu0 %v373
  %v375 = vpop.xlane.xlu0 %374
  %v376 = vrcp.pop %v372
  %v377 = vmul.f32 %v364, %v376
  %v378 = vrcp.pop %v375
  %v379 = vmul.f32 %v367, %v378
  %vm380 = vcmp.ne.f32.partialorder %v377, %v377
  %vm381 = vcmp.ne.f32.partialorder %v379, %v379
  %v382 = vsel %vm380, 0.0, %v377
  %v383 = vsel %vm381, 0.0, %v379
  %vm384 = vcmp.eq.f32.partialorder %v382, inf
  %vm385 = vcmp.eq.f32.partialorder %v383, inf
  %v386 = vsel %vm384, 3.4028235e+38, %v382
  %v387 = vsel %vm385, 3.4028235e+38, %v383
  %vm388 = vcmp.eq.f32.partialorder %v386, -inf
  %vm389 = vcmp.eq.f32.partialorder %v387, -inf
  %v390 = vsel %vm388, -3.4028235e+38, %v386
  %v391 = vsel %vm389, -3.4028235e+38, %v387
  %vm392 = vcmp.ge.f32.partialorder %v390, 0.0
  %vm393 = vcmp.ge.f32.partialorder %v391, 0.0
  %v394 = vmul.f32 %v390, 0.01
  %v395 = vmul.f32 %v391, 0.01
  %v396 = vsel %vm392, %v390, %v394
  %v397 = vsel %vm393, %v391, %v395
  %v399 = vlaneseq
  %v400 = vshrl.u32 %v399, 7
  %v401 = vsub.s32 0, %v400
  %v402 = vrot.slane %v100, %v401
  %v404 = vmul.f32 %v213, %v402
  %v405 = vmul.f32 %v216, %v402
  %v406 = vsel %vm122, %v404, 0.0
  %407 = vadd.xlane.f32.xlu0 %v406
  %v408 = vpop.xlane.xlu0 %407
  %v409 = vsel %vm122, %v405, 0.0
  %410 = vadd.xlane.f32.xlu0 %v409
  %v411 = vpop.xlane.xlu0 %410
  %v412 = vpack.c.bf16 %v101, %v101
  %v413 = vpack.c.bf16 %v216, %v213
  %v415 = vsel %vm122, %v412, 0
  %v418 = vsel %vm122, %v413, 0
  %420 = vmatprep.subr.bf16.mxu0 0
  %421 = vmatpush1.bf16.xpose.msra.mxu0 %v418
  %422 = vmatprep.subr.bf16.mxu0 0
  %423 = vmatpush1.bf16.xpose.msra.mxu0 0
  %424 = vmatprep.subr.bf16.mxu0 0
  %425 = vmatpush1.bf16.xpose.msra.mxu0 0
  %426 = vmatprep.subr.bf16.mxu0 0
  %427 = vmatpush1.bf16.xpose.msra.mxu0 0
  %428 = vmatprep.subr.bf16.mxu0 0
  %429 = vmatpush1.bf16.xpose.msra.mxu0 0
  %430 = vmatprep.subr.bf16.mxu0 0
  %431 = vmatpush1.bf16.xpose.msra.mxu0 0
  %432 = vmatprep.subr.bf16.mxu0 0
  %433 = vmatpush1.bf16.xpose.msra.mxu0 0
  %434 = vmatprep.subr.bf16.mxu0 0
  %435 = vmatpush1.bf16.xpose.msra.mxu0 0
  %436 = vmatprep.subr.bf16.mxu0 0
  %437 = vmatpush1.bf16.xpose.msra.mxu0 0
  %438 = vmatprep.subr.bf16.mxu0 0
  %439 = vmatpush1.bf16.xpose.msra.mxu0 0
  %440 = vmatprep.subr.bf16.mxu0 0
  %441 = vmatpush1.bf16.xpose.msra.mxu0 0
  %442 = vmatprep.subr.bf16.mxu0 0
  %443 = vmatpush1.bf16.xpose.msra.mxu0 0
  %444 = vmatprep.subr.bf16.mxu0 0
  %445 = vmatpush1.bf16.xpose.msra.mxu0 0
  %446 = vmatprep.subr.bf16.mxu0 0
  %447 = vmatpush1.bf16.xpose.msra.mxu0 0
  %448 = vmatprep.subr.bf16.mxu0 0
  %449 = vmatpush1.bf16.xpose.msra.mxu0 0
  %450 = vmatprep.subr.bf16.mxu0 0
  %451 = vmatpush1.bf16.xpose.msra.mxu0 0
  %452 = vmatprep.mubr.bf16.mxu0 0
  %453 = vmatmul.mubr.bf16.gmra.mrb[0].mxu0 %v415
  %v454 = vpop.f32.mrb[0].mxu0
  %v455 = vadd.f32 0.0, %v454
  %v456 = vpop.f32.mrb[0].mxu0
  %v457 = vpop.f32.mrb[0].mxu0
  %v458 = vpop.f32.mrb[0].mxu0
  %459 = vdwg.mxu0
  %v460 = vlaneseq
  %v461 = vshrl.u32 %v460, 7
  %v462 = vsub.s32 0, %v461
  %v463 = vrot.slane %v455, %v462
  %v464 = vadd.f32 %v408, %v463
  %v465 = vadd.f32 %v411, %v463
  %vm466 = vcmp.ge.f32.partialorder %v464, 0.0
  %vm467 = vcmp.ge.f32.partialorder %v465, 0.0
  %v468 = vmul.f32 %v464, 0.01
  %v469 = vmul.f32 %v465, 0.01
  %v470 = vsel %vm466, %v464, %v468
  %v471 = vsel %vm467, %v465, %v469
  %v472 = vmul.f32 %v470, 1.442695
  %v473 = vpow.pop %v472
  %v474 = vmul.f32 %v471, 1.442695
  %v475 = vpow.pop %v474
  %v476 = vmul.f32 %v473, %v90
  %v477 = vmul.f32 %v475, %v91
  %vm478 = vcmask 130048
  %v479 = vsel %vm478, %v476, 0.0
  %480 = vadd.xlane.f32.xlu0 %v479
  %v481 = vpop.xlane.xlu0 %480
  %v482 = vsel %vm478, %v477, 0.0
  %483 = vadd.xlane.f32.xlu0 %v482
  %v484 = vpop.xlane.xlu0 %483
  %v485 = vrcp.pop %v481
  %v486 = vmul.f32 %v473, %v485
  %v487 = vrcp.pop %v484
  %v488 = vmul.f32 %v475, %v487
  %v489 = vmul.f32 %v486, %v90
  %v490 = vmul.f32 %v488, %v91
  %vm491 = vcmp.ne.f32.partialorder %v489, %v489
  %vm492 = vcmp.ne.f32.partialorder %v490, %v490
  %v493 = vsel %vm491, 0.0, %v489
  %v494 = vsel %vm492, 0.0, %v490
  %vm495 = vcmp.eq.f32.partialorder %v493, inf
  %vm496 = vcmp.eq.f32.partialorder %v494, inf
  %v497 = vsel %vm495, 3.4028235e+38, %v493
  %v498 = vsel %vm496, 3.4028235e+38, %v494
  %vm499 = vcmp.eq.f32.partialorder %v497, -inf
  %vm500 = vcmp.eq.f32.partialorder %v498, -inf
  %v501 = vsel %vm499, -3.4028235e+38, %v497
  %v502 = vsel %vm500, -3.4028235e+38, %v498
  %v503 = vpack.c.bf16 %v502, %v501
  %v505 = vsel %vm478, %v503, 0
  %507 = vmatprep.subr.bf16.mxu0 0
  %508 = vmatpush1.bf16.msra.mxu0 %v413
  %509 = vmatprep.subr.bf16.mxu0 0
  %510 = vmatpush1.bf16.msra.mxu0 0
  %511 = vmatprep.subr.bf16.mxu0 0
  %512 = vmatpush1.bf16.msra.mxu0 0
  %513 = vmatprep.subr.bf16.mxu0 0
  %514 = vmatpush1.bf16.msra.mxu0 0
  %515 = vmatprep.subr.bf16.mxu0 0
  %516 = vmatpush1.bf16.msra.mxu0 0
  %517 = vmatprep.subr.bf16.mxu0 0
  %518 = vmatpush1.bf16.msra.mxu0 0
  %519 = vmatprep.subr.bf16.mxu0 0
  %520 = vmatpush1.bf16.msra.mxu0 0
  %521 = vmatprep.subr.bf16.mxu0 0
  %522 = vmatpush1.bf16.msra.mxu0 0
  %523 = vmatprep.subr.bf16.mxu0 0
  %524 = vmatpush1.bf16.msra.mxu0 0
  %525 = vmatprep.subr.bf16.mxu0 0
  %526 = vmatpush1.bf16.msra.mxu0 0
  %527 = vmatprep.subr.bf16.mxu0 0
  %528 = vmatpush1.bf16.msra.mxu0 0
  %529 = vmatprep.subr.bf16.mxu0 0
  %530 = vmatpush1.bf16.msra.mxu0 0
  %531 = vmatprep.subr.bf16.mxu0 0
  %532 = vmatpush1.bf16.msra.mxu0 0
  %533 = vmatprep.subr.bf16.mxu0 0
  %534 = vmatpush1.bf16.msra.mxu0 0
  %535 = vmatprep.subr.bf16.mxu0 0
  %536 = vmatpush1.bf16.msra.mxu0 0
  %537 = vmatprep.subr.bf16.mxu0 0
  %538 = vmatpush1.bf16.msra.mxu0 0
  %539 = vmatprep.mubr.bf16.mxu0 0
  %540 = vmatmul.mubr.bf16.gmra.mrb[0].mxu0 %v505
  %v541 = vpop.f32.mrb[0].mxu0
  %v542 = vadd.f32 0.0, %v541
  %v543 = vpop.f32.mrb[0].mxu0
  %v544 = vpop.f32.mrb[0].mxu0
  %v545 = vadd.f32 0.0, %v544
  %v546 = vpop.f32.mrb[0].mxu0
  %547 = vdwg.mxu0
  %v548 = vsel %vm478, %v90, 0.0
  %549 = vadd.xlane.f32.xlu0 %v548
  %v550 = vpop.xlane.xlu0 %549
  %v551 = vsel %vm478, %v91, 0.0
  %552 = vadd.xlane.f32.xlu0 %v551
  %v553 = vpop.xlane.xlu0 %552
  %v554 = vrcp.pop %v550
  %v555 = vmul.f32 %v542, %v554
  %v556 = vrcp.pop %v553
  %v557 = vmul.f32 %v545, %v556
  %vm558 = vcmp.ne.f32.partialorder %v555, %v555
  %vm559 = vcmp.ne.f32.partialorder %v557, %v557
  %v560 = vsel %vm558, 0.0, %v555
  %v561 = vsel %vm559, 0.0, %v557
  %vm562 = vcmp.eq.f32.partialorder %v560, inf
  %vm563 = vcmp.eq.f32.partialorder %v561, inf
  %v564 = vsel %vm562, 3.4028235e+38, %v560
  %v565 = vsel %vm563, 3.4028235e+38, %v561
  %vm566 = vcmp.eq.f32.partialorder %v564, -inf
  %vm567 = vcmp.eq.f32.partialorder %v565, -inf
  %v568 = vsel %vm566, -3.4028235e+38, %v564
  %v569 = vsel %vm567, -3.4028235e+38, %v565
  %vm570 = vcmp.ge.f32.partialorder %v568, 0.0
  %vm571 = vcmp.ge.f32.partialorder %v569, 0.0
  %v572 = vmul.f32 %v568, 0.01
  %v573 = vmul.f32 %v569, 0.01
  %v574 = vsel %vm570, %v568, %v572
  %v575 = vsel %vm571, %v569, %v573
  %v576 = vpack.c.bf16 %v102, %v102
  %v578 = vsel %vm126, %v576, 0
  %580 = vmatprep.subr.bf16.mxu0 0
  %581 = vmatpush1.bf16.msra.mxu0 %v578
  %582 = vmatprep.subr.bf16.mxu0 0
  %583 = vmatpush1.bf16.msra.mxu0 0
  %584 = vmatprep.subr.bf16.mxu0 0
  %585 = vmatpush1.bf16.msra.mxu0 0
  %586 = vmatprep.subr.bf16.mxu0 0
  %587 = vmatpush1.bf16.msra.mxu0 0
  %588 = vmatprep.subr.bf16.mxu0 0
  %589 = vmatpush1.bf16.msra.mxu0 0
  %590 = vmatprep.subr.bf16.mxu0 0
  %591 = vmatpush1.bf16.msra.mxu0 0
  %592 = vmatprep.subr.bf16.mxu0 0
  %593 = vmatpush1.bf16.msra.mxu0 0
  %594 = vmatprep.subr.bf16.mxu0 0
  %595 = vmatpush1.bf16.msra.mxu0 0
  %596 = vmatprep.subr.bf16.mxu0 0
  %597 = vmatpush1.bf16.msra.mxu0 0
  %598 = vmatprep.subr.bf16.mxu0 0
  %599 = vmatpush1.bf16.msra.mxu0 0
  %600 = vmatprep.subr.bf16.mxu0 0
  %601 = vmatpush1.bf16.msra.mxu0 0
  %602 = vmatprep.subr.bf16.mxu0 0
  %603 = vmatpush1.bf16.msra.mxu0 0
  %604 = vmatprep.subr.bf16.mxu0 0
  %605 = vmatpush1.bf16.msra.mxu0 0
  %606 = vmatprep.subr.bf16.mxu0 0
  %607 = vmatpush1.bf16.msra.mxu0 0
  %608 = vmatprep.subr.bf16.mxu0 0
  %609 = vmatpush1.bf16.msra.mxu0 0
  %610 = vmatprep.subr.bf16.mxu0 0
  %611 = vmatpush1.bf16.msra.mxu0 0
  %612 = vmatprep.mubr.bf16.mxu0 0
  %613 = vmatmul.mubr.bf16.gmra.mrb[0].mxu0 %v124
  %v614 = vpop.f32.mrb[0].mxu0
  %v615 = vadd.f32 0.0, %v614
  %v616 = vpop.f32.mrb[0].mxu0
  %v617 = vpop.f32.mrb[0].mxu0
  %v618 = vpop.f32.mrb[0].mxu0
  %619 = vdwg.mxu0
  %v620 = vpack.c.bf16 %v397, %v396
  %v621 = vpack.c.bf16 %v103, %v103
  %v622 = vpack.c.bf16 %v575, %v574
  %v623 = vpack.c.bf16 %v104, %v104
  %v625 = vsel %vm122, %v622, 0
  %v628 = vsel %vm126, %v623, 0
  %630 = vmatprep.subr.bf16.mxu0 0
  %631 = vmatpush1.bf16.msra.mxu0 %v628
  %632 = vmatprep.subr.bf16.mxu0 0
  %633 = vmatpush1.bf16.msra.mxu0 0
  %634 = vmatprep.subr.bf16.mxu0 0
  %635 = vmatpush1.bf16.msra.mxu0 0
  %636 = vmatprep.subr.bf16.mxu0 0
  %637 = vmatpush1.bf16.msra.mxu0 0
  %638 = vmatprep.subr.bf16.mxu0 0
  %639 = vmatpush1.bf16.msra.mxu0 0
  %640 = vmatprep.subr.bf16.mxu0 0
  %641 = vmatpush1.bf16.msra.mxu0 0
  %642 = vmatprep.subr.bf16.mxu0 0
  %643 = vmatpush1.bf16.msra.mxu0 0
  %644 = vmatprep.subr.bf16.mxu0 0
  %645 = vmatpush1.bf16.msra.mxu0 0
  %646 = vmatprep.subr.bf16.mxu0 0
  %647 = vmatpush1.bf16.msra.mxu0 0
  %648 = vmatprep.subr.bf16.mxu0 0
  %649 = vmatpush1.bf16.msra.mxu0 0
  %650 = vmatprep.subr.bf16.mxu0 0
  %651 = vmatpush1.bf16.msra.mxu0 0
  %652 = vmatprep.subr.bf16.mxu0 0
  %653 = vmatpush1.bf16.msra.mxu0 0
  %654 = vmatprep.subr.bf16.mxu0 0
  %655 = vmatpush1.bf16.msra.mxu0 0
  %656 = vmatprep.subr.bf16.mxu0 0
  %657 = vmatpush1.bf16.msra.mxu0 0
  %658 = vmatprep.subr.bf16.mxu0 0
  %659 = vmatpush1.bf16.msra.mxu0 0
  %660 = vmatprep.subr.bf16.mxu0 0
  %661 = vmatpush1.bf16.msra.mxu0 0
  %662 = vmatprep.mubr.bf16.mxu0 0
  %663 = vmatmul.mubr.bf16.gmra.mrb[0].mxu0 %v625
  %v664 = vpop.f32.mrb[0].mxu0
  %v665 = vadd.f32 0.0, %v664
  %v666 = vpop.f32.mrb[0].mxu0
  %v667 = vpop.f32.mrb[0].mxu0
  %v668 = vadd.f32 0.0, %v667
  %v669 = vpop.f32.mrb[0].mxu0
  %670 = vdwg.mxu0
  %v672 = vsel %vm122, %v620, 0
  %v675 = vsel %vm126, %v621, 0
  %677 = vmatprep.subr.bf16.mxu0 0
  %678 = vmatpush1.bf16.msra.mxu0 %v675
  %679 = vmatprep.subr.bf16.mxu0 0
  %680 = vmatpush1.bf16.msra.mxu0 0
  %681 = vmatprep.subr.bf16.mxu0 0
  %682 = vmatpush1.bf16.msra.mxu0 0
  %683 = vmatprep.subr.bf16.mxu0 0
  %684 = vmatpush1.bf16.msra.mxu0 0
  %685 = vmatprep.subr.bf16.mxu0 0
  %686 = vmatpush1.bf16.msra.mxu0 0
  %687 = vmatprep.subr.bf16.mxu0 0
  %688 = vmatpush1.bf16.msra.mxu0 0
  %689 = vmatprep.subr.bf16.mxu0 0
  %690 = vmatpush1.bf16.msra.mxu0 0
  %691 = vmatprep.subr.bf16.mxu0 0
  %692 = vmatpush1.bf16.msra.mxu0 0
  %693 = vmatprep.subr.bf16.mxu0 0
  %694 = vmatpush1.bf16.msra.mxu0 0
  %695 = vmatprep.subr.bf16.mxu0 0
  %696 = vmatpush1.bf16.msra.mxu0 0
  %697 = vmatprep.subr.bf16.mxu0 0
  %698 = vmatpush1.bf16.msra.mxu0 0
  %699 = vmatprep.subr.bf16.mxu0 0
  %700 = vmatpush1.bf16.msra.mxu0 0
  %701 = vmatprep.subr.bf16.mxu0 0
  %702 = vmatpush1.bf16.msra.mxu0 0
  %703 = vmatprep.subr.bf16.mxu0 0
  %704 = vmatpush1.bf16.msra.mxu0 0
  %705 = vmatprep.subr.bf16.mxu0 0
  %706 = vmatpush1.bf16.msra.mxu0 0
  %707 = vmatprep.subr.bf16.mxu0 0
  %708 = vmatpush1.bf16.msra.mxu0 0
  %709 = vmatprep.mubr.bf16.mxu0 0
  %710 = vmatmul.mubr.bf16.gmra.mrb[0].mxu0 %v672
  %v711 = vpop.f32.mrb[0].mxu0
  %v712 = vadd.f32 %v665, %v711
  %v713 = vpop.f32.mrb[0].mxu0
  %v714 = vpop.f32.mrb[0].mxu0
  %v715 = vadd.f32 %v668, %v714
  %v716 = vpop.f32.mrb[0].mxu0
  %717 = vdwg.mxu0
  %v719 = vlaneseq
  %v720 = vshrl.u32 %v719, 7
  %v721 = vsub.s32 0, %v720
  %v722 = vrot.slane %v105, %v721
  %v724 = vmul.f32 %v615, %v722
  %v725 = vsel %vm122, %v724, 0.0
  %726 = vadd.xlane.f32.xlu0 %v725
  %v727 = vpop.xlane.xlu0 %726
  %v728 = vpack.c.bf16 %v106, %v106
  %v729 = vpack.c.bf16 %v615, %v615
  %v731 = vsel %vm122, %v728, 0
  %v734 = vsel %vm122, %v729, 0
  %736 = vmatprep.subr.bf16.mxu0 0
  %737 = vmatpush1.bf16.xpose.msra.mxu0 %v734
  %738 = vmatprep.subr.bf16.mxu0 0
  %739 = vmatpush1.bf16.xpose.msra.mxu0 0
  %740 = vmatprep.subr.bf16.mxu0 0
  %741 = vmatpush1.bf16.xpose.msra.mxu0 0
  %742 = vmatprep.subr.bf16.mxu0 0
  %743 = vmatpush1.bf16.xpose.msra.mxu0 0
  %744 = vmatprep.subr.bf16.mxu0 0
  %745 = vmatpush1.bf16.xpose.msra.mxu0 0
  %746 = vmatprep.subr.bf16.mxu0 0
  %747 = vmatpush1.bf16.xpose.msra.mxu0 0
  %748 = vmatprep.subr.bf16.mxu0 0
  %749 = vmatpush1.bf16.xpose.msra.mxu0 0
  %750 = vmatprep.subr.bf16.mxu0 0
  %751 = vmatpush1.bf16.xpose.msra.mxu0 0
  %752 = vmatprep.subr.bf16.mxu0 0
  %753 = vmatpush1.bf16.xpose.msra.mxu0 0
  %754 = vmatprep.subr.bf16.mxu0 0
  %755 = vmatpush1.bf16.xpose.msra.mxu0 0
  %756 = vmatprep.subr.bf16.mxu0 0
  %757 = vmatpush1.bf16.xpose.msra.mxu0 0
  %758 = vmatprep.subr.bf16.mxu0 0
  %759 = vmatpush1.bf16.xpose.msra.mxu0 0
  %760 = vmatprep.subr.bf16.mxu0 0
  %761 = vmatpush1.bf16.xpose.msra.mxu0 0
  %762 = vmatprep.subr.bf16.mxu0 0
  %763 = vmatpush1.bf16.xpose.msra.mxu0 0
  %764 = vmatprep.subr.bf16.mxu0 0
  %765 = vmatpush1.bf16.xpose.msra.mxu0 0
  %766 = vmatprep.subr.bf16.mxu0 0
  %767 = vmatpush1.bf16.xpose.msra.mxu0 0
  %768 = vmatprep.mubr.bf16.mxu0 0
  %769 = vmatmul.mubr.bf16.gmra.mrb[0].mxu0 %v731
  %v770 = vpop.f32.mrb[0].mxu0
  %v771 = vadd.f32 0.0, %v770
  %v772 = vpop.f32.mrb[0].mxu0
  %v773 = vpop.f32.mrb[0].mxu0
  %v774 = vpop.f32.mrb[0].mxu0
  %775 = vdwg.mxu0
  %v776 = vlaneseq
  %v777 = vshrl.u32 %v776, 7
  %v778 = vsub.s32 0, %v777
  %v779 = vrot.slane %v771, %v778
  %v780 = vadd.f32 %v727, %v779
  %vm781 = vcmp.ge.f32.partialorder %v780, 0.0
  %v782 = vmul.f32 %v780, 0.01
  %v783 = vsel %vm781, %v780, %v782
  %v784 = vmul.f32 %v783, 1.442695
  %v785 = vpow.pop %v784
  %v786 = vmul.f32 %v785, %v95
  %v787 = vsel %vm122, %v786, 0.0
  %788 = vadd.xlane.f32.xlu0 %v787
  %v789 = vpop.xlane.xlu0 %788
  %v790 = vrcp.pop %v789
  %v791 = vmul.f32 %v785, %v790
  %v792 = vmul.f32 %v791, %v95
  %v793 = vpack.c.bf16 %v792, %v792
  %v795 = vsel %vm122, %v793, 0
  %v797 = vsel %vm126, %v729, 0
  %799 = vmatprep.subr.bf16.mxu0 0
  %800 = vmatpush1.bf16.msra.mxu0 %v797
  %801 = vmatprep.subr.bf16.mxu0 0
  %802 = vmatpush1.bf16.msra.mxu0 0
  %803 = vmatprep.subr.bf16.mxu0 0
  %804 = vmatpush1.bf16.msra.mxu0 0
  %805 = vmatprep.subr.bf16.mxu0 0
  %806 = vmatpush1.bf16.msra.mxu0 0
  %807 = vmatprep.subr.bf16.mxu0 0
  %808 = vmatpush1.bf16.msra.mxu0 0
  %809 = vmatprep.subr.bf16.mxu0 0
  %810 = vmatpush1.bf16.msra.mxu0 0
  %811 = vmatprep.subr.bf16.mxu0 0
  %812 = vmatpush1.bf16.msra.mxu0 0
  %813 = vmatprep.subr.bf16.mxu0 0
  %814 = vmatpush1.bf16.msra.mxu0 0
  %815 = vmatprep.subr.bf16.mxu0 0
  %816 = vmatpush1.bf16.msra.mxu0 0
  %817 = vmatprep.subr.bf16.mxu0 0
  %818 = vmatpush1.bf16.msra.mxu0 0
  %819 = vmatprep.subr.bf16.mxu0 0
  %820 = vmatpush1.bf16.msra.mxu0 0
  %821 = vmatprep.subr.bf16.mxu0 0
  %822 = vmatpush1.bf16.msra.mxu0 0
  %823 = vmatprep.subr.bf16.mxu0 0
  %824 = vmatpush1.bf16.msra.mxu0 0
  %825 = vmatprep.subr.bf16.mxu0 0
  %826 = vmatpush1.bf16.msra.mxu0 0
  %827 = vmatprep.subr.bf16.mxu0 0
  %828 = vmatpush1.bf16.msra.mxu0 0
  %829 = vmatprep.subr.bf16.mxu0 0
  %830 = vmatpush1.bf16.msra.mxu0 0
  %831 = vmatprep.mubr.bf16.mxu0 0
  %832 = vmatmul.mubr.bf16.gmra.mrb[0].mxu0 %v795
  %v833 = vpop.f32.mrb[0].mxu0
  %v834 = vadd.f32 0.0, %v833
  %v835 = vpop.f32.mrb[0].mxu0
  %v836 = vpop.f32.mrb[0].mxu0
  %v837 = vpop.f32.mrb[0].mxu0
  %838 = vdwg.mxu0
  %v839 = vsel %vm122, %v95, 0.0
  %840 = vadd.xlane.f32.xlu0 %v839
  %v841 = vpop.xlane.xlu0 %840
  %v842 = vrcp.pop %v841
  %v843 = vmul.f32 %v834, %v842
  %vm844 = vcmp.ne.f32.partialorder %v843, %v843
  %v845 = vsel %vm844, 0.0, %v843
  %vm846 = vcmp.eq.f32.partialorder %v845, inf
  %v847 = vsel %vm846, 3.4028235e+38, %v845
  %vm848 = vcmp.eq.f32.partialorder %v847, -inf
  %v849 = vsel %vm848, -3.4028235e+38, %v847
  %vm850 = vcmp.ge.f32.partialorder %v849, 0.0
  %v851 = vmul.f32 %v849, 0.01
  %v852 = vsel %vm850, %v849, %v851
  %v854 = vlaneseq
  %v855 = vshrl.u32 %v854, 7
  %v856 = vsub.s32 0, %v855
  %v857 = vrot.slane %v107, %v856
  %v859 = vmul.f32 %v615, %v857
  %v860 = vsel %vm122, %v859, 0.0
  %861 = vadd.xlane.f32.xlu0 %v860
  %v862 = vpop.xlane.xlu0 %861
  %v863 = vpack.c.bf16 %v108, %v108
  %v864 = vpack.c.bf16 %v715, %v712
  %v866 = vsel %vm122, %v863, 0
  %v869 = vsel %vm122, %v864, 0
  %871 = vmatprep.subr.bf16.mxu0 0
  %872 = vmatpush1.bf16.xpose.msra.mxu0 %v869
  %873 = vmatprep.subr.bf16.mxu0 0
  %874 = vmatpush1.bf16.xpose.msra.mxu0 0
  %875 = vmatprep.subr.bf16.mxu0 0
  %876 = vmatpush1.bf16.xpose.msra.mxu0 0
  %877 = vmatprep.subr.bf16.mxu0 0
  %878 = vmatpush1.bf16.xpose.msra.mxu0 0
  %879 = vmatprep.subr.bf16.mxu0 0
  %880 = vmatpush1.bf16.xpose.msra.mxu0 0
  %881 = vmatprep.subr.bf16.mxu0 0
  %882 = vmatpush1.bf16.xpose.msra.mxu0 0
  %883 = vmatprep.subr.bf16.mxu0 0
  %884 = vmatpush1.bf16.xpose.msra.mxu0 0
  %885 = vmatprep.subr.bf16.mxu0 0
  %886 = vmatpush1.bf16.xpose.msra.mxu0 0
  %887 = vmatprep.subr.bf16.mxu0 0
  %888 = vmatpush1.bf16.xpose.msra.mxu0 0
  %889 = vmatprep.subr.bf16.mxu0 0
  %890 = vmatpush1.bf16.xpose.msra.mxu0 0
  %891 = vmatprep.subr.bf16.mxu0 0
  %892 = vmatpush1.bf16.xpose.msra.mxu0 0
  %893 = vmatprep.subr.bf16.mxu0 0
  %894 = vmatpush1.bf16.xpose.msra.mxu0 0
  %895 = vmatprep.subr.bf16.mxu0 0
  %896 = vmatpush1.bf16.xpose.msra.mxu0 0
  %897 = vmatprep.subr.bf16.mxu0 0
  %898 = vmatpush1.bf16.xpose.msra.mxu0 0
  %899 = vmatprep.subr.bf16.mxu0 0
  %900 = vmatpush1.bf16.xpose.msra.mxu0 0
  %901 = vmatprep.subr.bf16.mxu0 0
  %902 = vmatpush1.bf16.xpose.msra.mxu0 0
  %903 = vmatprep.mubr.bf16.mxu0 0
  %904 = vmatmul.mubr.bf16.gmra.mrb[0].mxu0 %v866
  %v905 = vpop.f32.mrb[0].mxu0
  %v906 = vadd.f32 0.0, %v905
  %v907 = vpop.f32.mrb[0].mxu0
  %v908 = vpop.f32.mrb[0].mxu0
  %v909 = vpop.f32.mrb[0].mxu0
  %910 = vdwg.mxu0
  %v911 = vlaneseq
  %v912 = vshrl.u32 %v911, 7
  %v913 = vsub.s32 0, %v912
  %v914 = vrot.slane %v906, %v913
  %v915 = vadd.f32 %v862, %v914
  %vm916 = vcmp.ge.f32.partialorder %v915, 0.0
  %v917 = vmul.f32 %v915, 0.01
  %v918 = vsel %vm916, %v915, %v917
  %v919 = vmul.f32 %v918, 1.442695
  %v920 = vpow.pop %v919
  %v921 = vmul.f32 %v920, %v92
  %v922 = vsel %vm478, %v921, 0.0
  %923 = vadd.xlane.f32.xlu0 %v922
  %v924 = vpop.xlane.xlu0 %923
  %v925 = vrcp.pop %v924
  %v926 = vmul.f32 %v920, %v925
  %v927 = vmul.f32 %v926, %v92
  %vm928 = vcmp.ne.f32.partialorder %v927, %v927
  %v929 = vsel %vm928, 0.0, %v927
  %vm930 = vcmp.eq.f32.partialorder %v929, inf
  %v931 = vsel %vm930, 3.4028235e+38, %v929
  %vm932 = vcmp.eq.f32.partialorder %v931, -inf
  %v933 = vsel %vm932, -3.4028235e+38, %v931
  %v934 = vpack.c.bf16 %v933, %v933
  %v936 = vsel %vm478, %v934, 0
  %938 = vmatprep.subr.bf16.mxu0 0
  %939 = vmatpush1.bf16.msra.mxu0 %v864
  %940 = vmatprep.subr.bf16.mxu0 0
  %941 = vmatpush1.bf16.msra.mxu0 0
  %942 = vmatprep.subr.bf16.mxu0 0
  %943 = vmatpush1.bf16.msra.mxu0 0
  %944 = vmatprep.subr.bf16.mxu0 0
  %945 = vmatpush1.bf16.msra.mxu0 0
  %946 = vmatprep.subr.bf16.mxu0 0
  %947 = vmatpush1.bf16.msra.mxu0 0
  %948 = vmatprep.subr.bf16.mxu0 0
  %949 = vmatpush1.bf16.msra.mxu0 0
  %950 = vmatprep.subr.bf16.mxu0 0
  %951 = vmatpush1.bf16.msra.mxu0 0
  %952 = vmatprep.subr.bf16.mxu0 0
  %953 = vmatpush1.bf16.msra.mxu0 0
  %954 = vmatprep.subr.bf16.mxu0 0
  %955 = vmatpush1.bf16.msra.mxu0 0
  %956 = vmatprep.subr.bf16.mxu0 0
  %957 = vmatpush1.bf16.msra.mxu0 0
  %958 = vmatprep.subr.bf16.mxu0 0
  %959 = vmatpush1.bf16.msra.mxu0 0
  %960 = vmatprep.subr.bf16.mxu0 0
  %961 = vmatpush1.bf16.msra.mxu0 0
  %962 = vmatprep.subr.bf16.mxu0 0
  %963 = vmatpush1.bf16.msra.mxu0 0
  %964 = vmatprep.subr.bf16.mxu0 0
  %965 = vmatpush1.bf16.msra.mxu0 0
  %966 = vmatprep.subr.bf16.mxu0 0
  %967 = vmatpush1.bf16.msra.mxu0 0
  %968 = vmatprep.subr.bf16.mxu0 0
  %969 = vmatpush1.bf16.msra.mxu0 0
  %970 = vmatprep.mubr.bf16.mxu0 0
  %971 = vmatmul.mubr.bf16.gmra.mrb[0].mxu0 %v936
  %v972 = vpop.f32.mrb[0].mxu0
  %v973 = vadd.f32 0.0, %v972
  %v974 = vpop.f32.mrb[0].mxu0
  %v975 = vpop.f32.mrb[0].mxu0
  %v976 = vpop.f32.mrb[0].mxu0
  %977 = vdwg.mxu0
  %v978 = vsel %vm478, %v92, 0.0
  %979 = vadd.xlane.f32.xlu0 %v978
  %v980 = vpop.xlane.xlu0 %979
  %v981 = vrcp.pop %v980
  %v982 = vmul.f32 %v973, %v981
  %vm983 = vcmp.ne.f32.partialorder %v982, %v982
  %v984 = vsel %vm983, 0.0, %v982
  %vm985 = vcmp.eq.f32.partialorder %v984, inf
  %v986 = vsel %vm985, 3.4028235e+38, %v984
  %vm987 = vcmp.eq.f32.partialorder %v986, -inf
  %v988 = vsel %vm987, -3.4028235e+38, %v986
  %vm989 = vcmp.ge.f32.partialorder %v988, 0.0
  %v990 = vmul.f32 %v988, 0.01
  %v991 = vsel %vm989, %v988, %v990
  %v992 = vpack.c.bf16 %v852, %v852
  %v993 = vpack.c.bf16 %v109, %v109
  %v994 = vpack.c.bf16 %v991, %v991
  %v995 = vpack.c.bf16 %v110, %v110
  %v997 = vsel %vm122, %v994, 0
  %v1000 = vsel %vm126, %v995, 0
  %1002 = vmatprep.subr.bf16.mxu0 0
  %1003 = vmatpush1.bf16.msra.mxu0 %v1000
  %1004 = vmatprep.subr.bf16.mxu0 0
  %1005 = vmatpush1.bf16.msra.mxu0 0
  %1006 = vmatprep.subr.bf16.mxu0 0
  %1007 = vmatpush1.bf16.msra.mxu0 0
  %1008 = vmatprep.subr.bf16.mxu0 0
  %1009 = vmatpush1.bf16.msra.mxu0 0
  %1010 = vmatprep.subr.bf16.mxu0 0
  %1011 = vmatpush1.bf16.msra.mxu0 0
  %1012 = vmatprep.subr.bf16.mxu0 0
  %1013 = vmatpush1.bf16.msra.mxu0 0
  %1014 = vmatprep.subr.bf16.mxu0 0
  %1015 = vmatpush1.bf16.msra.mxu0 0
  %1016 = vmatprep.subr.bf16.mxu0 0
  %1017 = vmatpush1.bf16.msra.mxu0 0
  %1018 = vmatprep.subr.bf16.mxu0 0
  %1019 = vmatpush1.bf16.msra.mxu0 0
  %1020 = vmatprep.subr.bf16.mxu0 0
  %1021 = vmatpush1.bf16.msra.mxu0 0
  %1022 = vmatprep.subr.bf16.mxu0 0
  %1023 = vmatpush1.bf16.msra.mxu0 0
  %1024 = vmatprep.subr.bf16.mxu0 0
  %1025 = vmatpush1.bf16.msra.mxu0 0
  %1026 = vmatprep.subr.bf16.mxu0 0
  %1027 = vmatpush1.bf16.msra.mxu0 0
  %1028 = vmatprep.subr.bf16.mxu0 0
  %1029 = vmatpush1.bf16.msra.mxu0 0
  %1030 = vmatprep.subr.bf16.mxu0 0
  %1031 = vmatpush1.bf16.msra.mxu0 0
  %1032 = vmatprep.subr.bf16.mxu0 0
  %1033 = vmatpush1.bf16.msra.mxu0 0
  %1034 = vmatprep.mubr.bf16.mxu0 0
  %1035 = vmatmul.mubr.bf16.gmra.mrb[0].mxu0 %v997
  %v1036 = vpop.f32.mrb[0].mxu0
  %v1037 = vadd.f32 0.0, %v1036
  %v1038 = vpop.f32.mrb[0].mxu0
  %v1039 = vpop.f32.mrb[0].mxu0
  %v1040 = vpop.f32.mrb[0].mxu0
  %1041 = vdwg.mxu0
  %v1043 = vsel %vm122, %v992, 0
  %v1046 = vsel %vm126, %v993, 0
  %1048 = vmatprep.subr.bf16.mxu0 0
  %1049 = vmatpush1.bf16.msra.mxu0 %v1046
  %1050 = vmatprep.subr.bf16.mxu0 0
  %1051 = vmatpush1.bf16.msra.mxu0 0
  %1052 = vmatprep.subr.bf16.mxu0 0
  %1053 = vmatpush1.bf16.msra.mxu0 0
  %1054 = vmatprep.subr.bf16.mxu0 0
  %1055 = vmatpush1.bf16.msra.mxu0 0
  %1056 = vmatprep.subr.bf16.mxu0 0
  %1057 = vmatpush1.bf16.msra.mxu0 0
  %1058 = vmatprep.subr.bf16.mxu0 0
  %1059 = vmatpush1.bf16.msra.mxu0 0
  %1060 = vmatprep.subr.bf16.mxu0 0
  %1061 = vmatpush1.bf16.msra.mxu0 0
  %1062 = vmatprep.subr.bf16.mxu0 0
  %1063 = vmatpush1.bf16.msra.mxu0 0
  %1064 = vmatprep.subr.bf16.mxu0 0
  %1065 = vmatpush1.bf16.msra.mxu0 0
  %1066 = vmatprep.subr.bf16.mxu0 0
  %1067 = vmatpush1.bf16.msra.mxu0 0
  %1068 = vmatprep.subr.bf16.mxu0 0
  %1069 = vmatpush1.bf16.msra.mxu0 0
  %1070 = vmatprep.subr.bf16.mxu0 0
  %1071 = vmatpush1.bf16.msra.mxu0 0
  %1072 = vmatprep.subr.bf16.mxu0 0
  %1073 = vmatpush1.bf16.msra.mxu0 0
  %1074 = vmatprep.subr.bf16.mxu0 0
  %1075 = vmatpush1.bf16.msra.mxu0 0
  %1076 = vmatprep.subr.bf16.mxu0 0
  %1077 = vmatpush1.bf16.msra.mxu0 0
  %1078 = vmatprep.subr.bf16.mxu0 0
  %1079 = vmatpush1.bf16.msra.mxu0 0
  %1080 = vmatprep.mubr.bf16.mxu0 0
  %1081 = vmatmul.mubr.bf16.gmra.mrb[0].mxu0 %v1043
  %v1082 = vpop.f32.mrb[0].mxu0
  %v1083 = vadd.f32 %v1037, %v1082
  %v1084 = vpop.f32.mrb[0].mxu0
  %v1085 = vpop.f32.mrb[0].mxu0
  %v1086 = vpop.f32.mrb[0].mxu0
  %1087 = vdwg.mxu0
  %v1088 = vpack.c.bf16 %v111, %v111
  %v1089 = vpack.c.bf16 %v112, %v112
  %v1091 = vsel %vm126, %v1089, 0
  %1093 = vmatprep.subr.bf16.mxu0 0
  %1094 = vmatpush1.bf16.msra.mxu0 %v1091
  %1095 = vmatprep.subr.bf16.mxu0 0
  %1096 = vmatpush1.bf16.msra.mxu0 0
  %1097 = vmatprep.subr.bf16.mxu0 0
  %1098 = vmatpush1.bf16.msra.mxu0 0
  %1099 = vmatprep.subr.bf16.mxu0 0
  %1100 = vmatpush1.bf16.msra.mxu0 0
  %1101 = vmatprep.subr.bf16.mxu0 0
  %1102 = vmatpush1.bf16.msra.mxu0 0
  %1103 = vmatprep.subr.bf16.mxu0 0
  %1104 = vmatpush1.bf16.msra.mxu0 0
  %1105 = vmatprep.subr.bf16.mxu0 0
  %1106 = vmatpush1.bf16.msra.mxu0 0
  %1107 = vmatprep.subr.bf16.mxu0 0
  %1108 = vmatpush1.bf16.msra.mxu0 0
  %1109 = vmatprep.subr.bf16.mxu0 0
  %1110 = vmatpush1.bf16.msra.mxu0 0
  %1111 = vmatprep.subr.bf16.mxu0 0
  %1112 = vmatpush1.bf16.msra.mxu0 0
  %1113 = vmatprep.subr.bf16.mxu0 0
  %1114 = vmatpush1.bf16.msra.mxu0 0
  %1115 = vmatprep.subr.bf16.mxu0 0
  %1116 = vmatpush1.bf16.msra.mxu0 0
  %1117 = vmatprep.subr.bf16.mxu0 0
  %1118 = vmatpush1.bf16.msra.mxu0 0
  %1119 = vmatprep.subr.bf16.mxu0 0
  %1120 = vmatpush1.bf16.msra.mxu0 0
  %1121 = vmatprep.subr.bf16.mxu0 0
  %1122 = vmatpush1.bf16.msra.mxu0 0
  %1123 = vmatprep.subr.bf16.mxu0 0
  %1124 = vmatpush1.bf16.msra.mxu0 0
  %1125 = vmatprep.mubr.bf16.mxu0 0
  %1126 = vmatmul.mubr.bf16.gmra.mrb[0].mxu0 %v625
  %v1127 = vpop.f32.mrb[0].mxu0
  %v1128 = vadd.f32 0.0, %v1127
  %v1129 = vpop.f32.mrb[0].mxu0
  %v1130 = vpop.f32.mrb[0].mxu0
  %v1131 = vadd.f32 0.0, %v1130
  %v1132 = vpop.f32.mrb[0].mxu0
  %1133 = vdwg.mxu0
  %v1135 = vsel %vm126, %v1088, 0
  %1137 = vmatprep.subr.bf16.mxu0 0
  %1138 = vmatpush1.bf16.msra.mxu0 %v1135
  %1139 = vmatprep.subr.bf16.mxu0 0
  %1140 = vmatpush1.bf16.msra.mxu0 0
  %1141 = vmatprep.subr.bf16.mxu0 0
  %1142 = vmatpush1.bf16.msra.mxu0 0
  %1143 = vmatprep.subr.bf16.mxu0 0
  %1144 = vmatpush1.bf16.msra.mxu0 0
  %1145 = vmatprep.subr.bf16.mxu0 0
  %1146 = vmatpush1.bf16.msra.mxu0 0
  %1147 = vmatprep.subr.bf16.mxu0 0
  %1148 = vmatpush1.bf16.msra.mxu0 0
  %1149 = vmatprep.subr.bf16.mxu0 0
  %1150 = vmatpush1.bf16.msra.mxu0 0
  %1151 = vmatprep.subr.bf16.mxu0 0
  %1152 = vmatpush1.bf16.msra.mxu0 0
  %1153 = vmatprep.subr.bf16.mxu0 0
  %1154 = vmatpush1.bf16.msra.mxu0 0
  %1155 = vmatprep.subr.bf16.mxu0 0
  %1156 = vmatpush1.bf16.msra.mxu0 0
  %1157 = vmatprep.subr.bf16.mxu0 0
  %1158 = vmatpush1.bf16.msra.mxu0 0
  %1159 = vmatprep.subr.bf16.mxu0 0
  %1160 = vmatpush1.bf16.msra.mxu0 0
  %1161 = vmatprep.subr.bf16.mxu0 0
  %1162 = vmatpush1.bf16.msra.mxu0 0
  %1163 = vmatprep.subr.bf16.mxu0 0
  %1164 = vmatpush1.bf16.msra.mxu0 0
  %1165 = vmatprep.subr.bf16.mxu0 0
  %1166 = vmatpush1.bf16.msra.mxu0 0
  %1167 = vmatprep.subr.bf16.mxu0 0
  %1168 = vmatpush1.bf16.msra.mxu0 0
  %1169 = vmatprep.mubr.bf16.mxu0 0
  %1170 = vmatmul.mubr.bf16.gmra.mrb[0].mxu0 %v672
  %v1171 = vpop.f32.mrb[0].mxu0
  %v1172 = vadd.f32 %v1128, %v1171
  %v1173 = vpop.f32.mrb[0].mxu0
  %v1174 = vpop.f32.mrb[0].mxu0
  %v1175 = vadd.f32 %v1131, %v1174
  %v1176 = vpop.f32.mrb[0].mxu0
  %1177 = vdwg.mxu0
  %v1179 = vlaneseq
  %v1180 = vshrl.u32 %v1179, 7
  %v1181 = vsub.s32 0, %v1180
  %v1182 = vrot.slane %v113, %v1181
  %v1184 = vmul.f32 %v1172, %v1182
  %v1185 = vmul.f32 %v1175, %v1182
  %v1186 = vsel %vm122, %v1184, 0.0
  %1187 = vadd.xlane.f32.xlu0 %v1186
  %v1188 = vpop.xlane.xlu0 %1187
  %v1189 = vsel %vm122, %v1185, 0.0
  %1190 = vadd.xlane.f32.xlu0 %v1189
  %v1191 = vpop.xlane.xlu0 %1190
  %v1192 = vpack.c.bf16 %v114, %v114
  %v1193 = vpack.c.bf16 %v1083, %v1083
  %v1195 = vsel %vm122, %v1192, 0
  %v1198 = vsel %vm122, %v1193, 0
  %1200 = vmatprep.subr.bf16.mxu0 0
  %1201 = vmatpush1.bf16.xpose.msra.mxu0 %v1198
  %1202 = vmatprep.subr.bf16.mxu0 0
  %1203 = vmatpush1.bf16.xpose.msra.mxu0 0
  %1204 = vmatprep.subr.bf16.mxu0 0
  %1205 = vmatpush1.bf16.xpose.msra.mxu0 0
  %1206 = vmatprep.subr.bf16.mxu0 0
  %1207 = vmatpush1.bf16.xpose.msra.mxu0 0
  %1208 = vmatprep.subr.bf16.mxu0 0
  %1209 = vmatpush1.bf16.xpose.msra.mxu0 0
  %1210 = vmatprep.subr.bf16.mxu0 0
  %1211 = vmatpush1.bf16.xpose.msra.mxu0 0
  %1212 = vmatprep.subr.bf16.mxu0 0
  %1213 = vmatpush1.bf16.xpose.msra.mxu0 0
  %1214 = vmatprep.subr.bf16.mxu0 0
  %1215 = vmatpush1.bf16.xpose.msra.mxu0 0
  %1216 = vmatprep.subr.bf16.mxu0 0
  %1217 = vmatpush1.bf16.xpose.msra.mxu0 0
  %1218 = vmatprep.subr.bf16.mxu0 0
  %1219 = vmatpush1.bf16.xpose.msra.mxu0 0
  %1220 = vmatprep.subr.bf16.mxu0 0
  %1221 = vmatpush1.bf16.xpose.msra.mxu0 0
  %1222 = vmatprep.subr.bf16.mxu0 0
  %1223 = vmatpush1.bf16.xpose.msra.mxu0 0
  %1224 = vmatprep.subr.bf16.mxu0 0
  %1225 = vmatpush1.bf16.xpose.msra.mxu0 0
  %1226 = vmatprep.subr.bf16.mxu0 0
  %1227 = vmatpush1.bf16.xpose.msra.mxu0 0
  %1228 = vmatprep.subr.bf16.mxu0 0
  %1229 = vmatpush1.bf16.xpose.msra.mxu0 0
  %1230 = vmatprep.subr.bf16.mxu0 0
  %1231 = vmatpush1.bf16.xpose.msra.mxu0 0
  %1232 = vmatprep.mubr.bf16.mxu0 0
  %1233 = vmatmul.mubr.bf16.gmra.mrb[0].mxu0 %v1195
  %v1234 = vpop.f32.mrb[0].mxu0
  %v1235 = vadd.f32 0.0, %v1234
  %v1236 = vpop.f32.mrb[0].mxu0
  %v1237 = vpop.f32.mrb[0].mxu0
  %v1238 = vpop.f32.mrb[0].mxu0
  %1239 = vdwg.mxu0
  %v1240 = vlaneseq
  %v1241 = vshrl.u32 %v1240, 7
  %v1242 = vsub.s32 0, %v1241
  %v1243 = vrot.slane %v1235, %v1242
  %v1244 = vadd.f32 %v1188, %v1243
  %v1245 = vadd.f32 %v1191, %v1243
  %vm1246 = vcmp.ge.f32.partialorder %v1244, 0.0
  %vm1247 = vcmp.ge.f32.partialorder %v1245, 0.0
  %v1248 = vmul.f32 %v1244, 0.01
  %v1249 = vmul.f32 %v1245, 0.01
  %v1250 = vsel %vm1246, %v1244, %v1248
  %v1251 = vsel %vm1247, %v1245, %v1249
  %v1252 = vmul.f32 %v1250, 1.442695
  %v1253 = vpow.pop %v1252
  %v1254 = vmul.f32 %v1251, 1.442695
  %v1255 = vpow.pop %v1254
  %v1256 = vmul.f32 %v1253, %v93
  %v1257 = vmul.f32 %v1255, %v94
  %v1258 = vsel %vm122, %v1256, 0.0
  %1259 = vadd.xlane.f32.xlu0 %v1258
  %v1260 = vpop.xlane.xlu0 %1259
  %v1261 = vsel %vm122, %v1257, 0.0
  %1262 = vadd.xlane.f32.xlu0 %v1261
  %v1263 = vpop.xlane.xlu0 %1262
  %v1264 = vrcp.pop %v1260
  %v1265 = vmul.f32 %v1253, %v1264
  %v1266 = vrcp.pop %v1263
  %v1267 = vmul.f32 %v1255, %v1266
  %v1268 = vmul.f32 %v1265, %v93
  %v1269 = vmul.f32 %v1267, %v94
  %vm1270 = vcmp.ne.f32.partialorder %v1268, %v1268
  %vm1271 = vcmp.ne.f32.partialorder %v1269, %v1269
  %v1272 = vsel %vm1270, 0.0, %v1268
  %v1273 = vsel %vm1271, 0.0, %v1269
  %vm1274 = vcmp.eq.f32.partialorder %v1272, inf
  %vm1275 = vcmp.eq.f32.partialorder %v1273, inf
  %v1276 = vsel %vm1274, 3.4028235e+38, %v1272
  %v1277 = vsel %vm1275, 3.4028235e+38, %v1273
  %vm1278 = vcmp.eq.f32.partialorder %v1276, -inf
  %vm1279 = vcmp.eq.f32.partialorder %v1277, -inf
  %v1280 = vsel %vm1278, -3.4028235e+38, %v1276
  %v1281 = vsel %vm1279, -3.4028235e+38, %v1277
  %v1282 = vpack.c.bf16 %v1281, %v1280
  %v1284 = vsel %vm122, %v1282, 0
  %v1286 = vsel %vm126, %v1193, 0
  %1288 = vmatprep.subr.bf16.mxu0 0
  %1289 = vmatpush1.bf16.msra.mxu0 %v1286
  %1290 = vmatprep.subr.bf16.mxu0 0
  %1291 = vmatpush1.bf16.msra.mxu0 0
  %1292 = vmatprep.subr.bf16.mxu0 0
  %1293 = vmatpush1.bf16.msra.mxu0 0
  %1294 = vmatprep.subr.bf16.mxu0 0
  %1295 = vmatpush1.bf16.msra.mxu0 0
  %1296 = vmatprep.subr.bf16.mxu0 0
  %1297 = vmatpush1.bf16.msra.mxu0 0
  %1298 = vmatprep.subr.bf16.mxu0 0
  %1299 = vmatpush1.bf16.msra.mxu0 0
  %1300 = vmatprep.subr.bf16.mxu0 0
  %1301 = vmatpush1.bf16.msra.mxu0 0
  %1302 = vmatprep.subr.bf16.mxu0 0
  %1303 = vmatpush1.bf16.msra.mxu0 0
  %1304 = vmatprep.subr.bf16.mxu0 0
  %1305 = vmatpush1.bf16.msra.mxu0 0
  %1306 = vmatprep.subr.bf16.mxu0 0
  %1307 = vmatpush1.bf16.msra.mxu0 0
  %1308 = vmatprep.subr.bf16.mxu0 0
  %1309 = vmatpush1.bf16.msra.mxu0 0
  %1310 = vmatprep.subr.bf16.mxu0 0
  %1311 = vmatpush1.bf16.msra.mxu0 0
  %1312 = vmatprep.subr.bf16.mxu0 0
  %1313 = vmatpush1.bf16.msra.mxu0 0
  %1314 = vmatprep.subr.bf16.mxu0 0
  %1315 = vmatpush1.bf16.msra.mxu0 0
  %1316 = vmatprep.subr.bf16.mxu0 0
  %1317 = vmatpush1.bf16.msra.mxu0 0
  %1318 = vmatprep.subr.bf16.mxu0 0
  %1319 = vmatpush1.bf16.msra.mxu0 0
  %1320 = vmatprep.mubr.bf16.mxu0 0
  %1321 = vmatmul.mubr.bf16.gmra.mrb[0].mxu0 %v1284
  %v1322 = vpop.f32.mrb[0].mxu0
  %v1323 = vadd.f32 0.0, %v1322
  %v1324 = vpop.f32.mrb[0].mxu0
  %v1325 = vpop.f32.mrb[0].mxu0
  %v1326 = vadd.f32 0.0, %v1325
  %v1327 = vpop.f32.mrb[0].mxu0
  %1328 = vdwg.mxu0
  %v1329 = vmul.f32 %v1323, %v376
  %v1330 = vmul.f32 %v1326, %v378
  %vm1331 = vcmp.ne.f32.partialorder %v1329, %v1329
  %vm1332 = vcmp.ne.f32.partialorder %v1330, %v1330
  %v1333 = vsel %vm1331, 0.0, %v1329
  %v1334 = vsel %vm1332, 0.0, %v1330
  %vm1335 = vcmp.eq.f32.partialorder %v1333, inf
  %vm1336 = vcmp.eq.f32.partialorder %v1334, inf
  %v1337 = vsel %vm1335, 3.4028235e+38, %v1333
  %v1338 = vsel %vm1336, 3.4028235e+38, %v1334
  %vm1339 = vcmp.eq.f32.partialorder %v1337, -inf
  %vm1340 = vcmp.eq.f32.partialorder %v1338, -inf
  %v1341 = vsel %vm1339, -3.4028235e+38, %v1337
  %v1342 = vsel %vm1340, -3.4028235e+38, %v1338
  %vm1343 = vcmp.ge.f32.partialorder %v1341, 0.0
  %vm1344 = vcmp.ge.f32.partialorder %v1342, 0.0
  %v1345 = vmul.f32 %v1341, 0.01
  %v1346 = vmul.f32 %v1342, 0.01
  %v1347 = vsel %vm1343, %v1341, %v1345
  %v1348 = vsel %vm1344, %v1342, %v1346
  %v1350 = vlaneseq
  %v1351 = vshrl.u32 %v1350, 7
  %v1352 = vsub.s32 0, %v1351
  %v1353 = vrot.slane %v115, %v1352
  %v1355 = vmul.f32 %v1172, %v1353
  %v1356 = vmul.f32 %v1175, %v1353
  %v1357 = vsel %vm122, %v1355, 0.0
  %1358 = vadd.xlane.f32.xlu0 %v1357
  %v1359 = vpop.xlane.xlu0 %1358
  %v1360 = vsel %vm122, %v1356, 0.0
  %1361 = vadd.xlane.f32.xlu0 %v1360
  %v1362 = vpop.xlane.xlu0 %1361
  %v1363 = vpack.c.bf16 %v116, %v116
  %v1364 = vpack.c.bf16 %v1175, %v1172
  %v1366 = vsel %vm122, %v1363, 0
  %v1369 = vsel %vm122, %v1364, 0
  %1371 = vmatprep.subr.bf16.mxu0 0
  %1372 = vmatpush1.bf16.xpose.msra.mxu0 %v1369
  %1373 = vmatprep.subr.bf16.mxu0 0
  %1374 = vmatpush1.bf16.xpose.msra.mxu0 0
  %1375 = vmatprep.subr.bf16.mxu0 0
  %1376 = vmatpush1.bf16.xpose.msra.mxu0 0
  %1377 = vmatprep.subr.bf16.mxu0 0
  %1378 = vmatpush1.bf16.xpose.msra.mxu0 0
  %1379 = vmatprep.subr.bf16.mxu0 0
  %1380 = vmatpush1.bf16.xpose.msra.mxu0 0
  %1381 = vmatprep.subr.bf16.mxu0 0
  %1382 = vmatpush1.bf16.xpose.msra.mxu0 0
  %1383 = vmatprep.subr.bf16.mxu0 0
  %1384 = vmatpush1.bf16.xpose.msra.mxu0 0
  %1385 = vmatprep.subr.bf16.mxu0 0
  %1386 = vmatpush1.bf16.xpose.msra.mxu0 0
  %1387 = vmatprep.subr.bf16.mxu0 0
  %1388 = vmatpush1.bf16.xpose.msra.mxu0 0
  %1389 = vmatprep.subr.bf16.mxu0 0
  %1390 = vmatpush1.bf16.xpose.msra.mxu0 0
  %1391 = vmatprep.subr.bf16.mxu0 0
  %1392 = vmatpush1.bf16.xpose.msra.mxu0 0
  %1393 = vmatprep.subr.bf16.mxu0 0
  %1394 = vmatpush1.bf16.xpose.msra.mxu0 0
  %1395 = vmatprep.subr.bf16.mxu0 0
  %1396 = vmatpush1.bf16.xpose.msra.mxu0 0
  %1397 = vmatprep.subr.bf16.mxu0 0
  %1398 = vmatpush1.bf16.xpose.msra.mxu0 0
  %1399 = vmatprep.subr.bf16.mxu0 0
  %1400 = vmatpush1.bf16.xpose.msra.mxu0 0
  %1401 = vmatprep.subr.bf16.mxu0 0
  %1402 = vmatpush1.bf16.xpose.msra.mxu0 0
  %1403 = vmatprep.mubr.bf16.mxu0 0
  %1404 = vmatmul.mubr.bf16.gmra.mrb[0].mxu0 %v1366
  %v1405 = vpop.f32.mrb[0].mxu0
  %v1406 = vadd.f32 0.0, %v1405
  %v1407 = vpop.f32.mrb[0].mxu0
  %v1408 = vpop.f32.mrb[0].mxu0
  %v1409 = vpop.f32.mrb[0].mxu0
  %1410 = vdwg.mxu0
  %v1411 = vlaneseq
  %v1412 = vshrl.u32 %v1411, 7
  %v1413 = vsub.s32 0, %v1412
  %v1414 = vrot.slane %v1406, %v1413
  %v1415 = vadd.f32 %v1359, %v1414
  %v1416 = vadd.f32 %v1362, %v1414
  %vm1417 = vcmp.ge.f32.partialorder %v1415, 0.0
  %vm1418 = vcmp.ge.f32.partialorder %v1416, 0.0
  %v1419 = vmul.f32 %v1415, 0.01
  %v1420 = vmul.f32 %v1416, 0.01
  %v1421 = vsel %vm1417, %v1415, %v1419
  %v1422 = vsel %vm1418, %v1416, %v1420
  %v1423 = vmul.f32 %v1421, 1.442695
  %v1424 = vpow.pop %v1423
  %v1425 = vmul.f32 %v1422, 1.442695
  %v1426 = vpow.pop %v1425
  %v1427 = vmul.f32 %v1424, %v90
  %v1428 = vmul.f32 %v1426, %v91
  %v1429 = vsel %vm478, %v1427, 0.0
  %1430 = vadd.xlane.f32.xlu0 %v1429
  %v1431 = vpop.xlane.xlu0 %1430
  %v1432 = vsel %vm478, %v1428, 0.0
  %1433 = vadd.xlane.f32.xlu0 %v1432
  %v1434 = vpop.xlane.xlu0 %1433
  %v1435 = vrcp.pop %v1431
  %v1436 = vmul.f32 %v1424, %v1435
  %v1437 = vrcp.pop %v1434
  %v1438 = vmul.f32 %v1426, %v1437
  %v1439 = vmul.f32 %v1436, %v90
  %v1440 = vmul.f32 %v1438, %v91
  %vm1441 = vcmp.ne.f32.partialorder %v1439, %v1439
  %vm1442 = vcmp.ne.f32.partialorder %v1440, %v1440
  %v1443 = vsel %vm1441, 0.0, %v1439
  %v1444 = vsel %vm1442, 0.0, %v1440
  %vm1445 = vcmp.eq.f32.partialorder %v1443, inf
  %vm1446 = vcmp.eq.f32.partialorder %v1444, inf
  %v1447 = vsel %vm1445, 3.4028235e+38, %v1443
  %v1448 = vsel %vm1446, 3.4028235e+38, %v1444
  %vm1449 = vcmp.eq.f32.partialorder %v1447, -inf
  %vm1450 = vcmp.eq.f32.partialorder %v1448, -inf
  %v1451 = vsel %vm1449, -3.4028235e+38, %v1447
  %v1452 = vsel %vm1450, -3.4028235e+38, %v1448
  %v1453 = vpack.c.bf16 %v1452, %v1451
  %v1455 = vsel %vm478, %v1453, 0
  %1457 = vmatprep.subr.bf16.mxu0 0
  %1458 = vmatpush1.bf16.msra.mxu0 %v1364
  %1459 = vmatprep.subr.bf16.mxu0 0
  %1460 = vmatpush1.bf16.msra.mxu0 0
  %1461 = vmatprep.subr.bf16.mxu0 0
  %1462 = vmatpush1.bf16.msra.mxu0 0
  %1463 = vmatprep.subr.bf16.mxu0 0
  %1464 = vmatpush1.bf16.msra.mxu0 0
  %1465 = vmatprep.subr.bf16.mxu0 0
  %1466 = vmatpush1.bf16.msra.mxu0 0
  %1467 = vmatprep.subr.bf16.mxu0 0
  %1468 = vmatpush1.bf16.msra.mxu0 0
  %1469 = vmatprep.subr.bf16.mxu0 0
  %1470 = vmatpush1.bf16.msra.mxu0 0
  %1471 = vmatprep.subr.bf16.mxu0 0
  %1472 = vmatpush1.bf16.msra.mxu0 0
  %1473 = vmatprep.subr.bf16.mxu0 0
  %1474 = vmatpush1.bf16.msra.mxu0 0
  %1475 = vmatprep.subr.bf16.mxu0 0
  %1476 = vmatpush1.bf16.msra.mxu0 0
  %1477 = vmatprep.subr.bf16.mxu0 0
  %1478 = vmatpush1.bf16.msra.mxu0 0
  %1479 = vmatprep.subr.bf16.mxu0 0
  %1480 = vmatpush1.bf16.msra.mxu0 0
  %1481 = vmatprep.subr.bf16.mxu0 0
  %1482 = vmatpush1.bf16.msra.mxu0 0
  %1483 = vmatprep.subr.bf16.mxu0 0
  %1484 = vmatpush1.bf16.msra.mxu0 0
  %1485 = vmatprep.subr.bf16.mxu0 0
  %1486 = vmatpush1.bf16.msra.mxu0 0
  %1487 = vmatprep.subr.bf16.mxu0 0
  %1488 = vmatpush1.bf16.msra.mxu0 0
  %1489 = vmatprep.mubr.bf16.mxu0 0
  %1490 = vmatmul.mubr.bf16.gmra.mrb[0].mxu0 %v1455
  %v1491 = vpop.f32.mrb[0].mxu0
  %v1492 = vadd.f32 0.0, %v1491
  %v1493 = vpop.f32.mrb[0].mxu0
  %v1494 = vpop.f32.mrb[0].mxu0
  %v1495 = vadd.f32 0.0, %v1494
  %v1496 = vpop.f32.mrb[0].mxu0
  %1497 = vdwg.mxu0
  %v1498 = vmul.f32 %v1492, %v554
  %v1499 = vmul.f32 %v1495, %v556
  %vm1500 = vcmp.ne.f32.partialorder %v1498, %v1498
  %vm1501 = vcmp.ne.f32.partialorder %v1499, %v1499
  %v1502 = vsel %vm1500, 0.0, %v1498
  %v1503 = vsel %vm1501, 0.0, %v1499
  %vm1504 = vcmp.eq.f32.partialorder %v1502, inf
  %vm1505 = vcmp.eq.f32.partialorder %v1503, inf
  %v1506 = vsel %vm1504, 3.4028235e+38, %v1502
  %v1507 = vsel %vm1505, 3.4028235e+38, %v1503
  %vm1508 = vcmp.eq.f32.partialorder %v1506, -inf
  %vm1509 = vcmp.eq.f32.partialorder %v1507, -inf
  %v1510 = vsel %vm1508, -3.4028235e+38, %v1506
  %v1511 = vsel %vm1509, -3.4028235e+38, %v1507
  %vm1512 = vcmp.ge.f32.partialorder %v1510, 0.0
  %vm1513 = vcmp.ge.f32.partialorder %v1511, 0.0
  %v1514 = vmul.f32 %v1510, 0.01
  %v1515 = vmul.f32 %v1511, 0.01
  %v1516 = vsel %vm1512, %v1510, %v1514
  %v1517 = vsel %vm1513, %v1511, %v1515
  %v1518 = vpack.c.bf16 %v1348, %v1347
  %v1519 = vpack.c.bf16 %v117, %v117
  %v1520 = vpack.c.bf16 %v1517, %v1516
  %v1521 = vpack.c.bf16 %v118, %v118
  %v1523 = vsel %vm122, %v1520, 0
  %v1526 = vsel %vm126, %v1521, 0
  %1528 = vmatprep.subr.bf16.mxu0 0
  %1529 = vmatpush1.bf16.msra.mxu0 %v1526
  %1530 = vmatprep.subr.bf16.mxu0 0
  %1531 = vmatpush1.bf16.msra.mxu0 0
  %1532 = vmatprep.subr.bf16.mxu0 0
  %1533 = vmatpush1.bf16.msra.mxu0 0
  %1534 = vmatprep.subr.bf16.mxu0 0
  %1535 = vmatpush1.bf16.msra.mxu0 0
  %1536 = vmatprep.subr.bf16.mxu0 0
  %1537 = vmatpush1.bf16.msra.mxu0 0
  %1538 = vmatprep.subr.bf16.mxu0 0
  %1539 = vmatpush1.bf16.msra.mxu0 0
  %1540 = vmatprep.subr.bf16.mxu0 0
  %1541 = vmatpush1.bf16.msra.mxu0 0
  %1542 = vmatprep.subr.bf16.mxu0 0
  %1543 = vmatpush1.bf16.msra.mxu0 0
  %1544 = vmatprep.subr.bf16.mxu0 0
  %1545 = vmatpush1.bf16.msra.mxu0 0
  %1546 = vmatprep.subr.bf16.mxu0 0
  %1547 = vmatpush1.bf16.msra.mxu0 0
  %1548 = vmatprep.subr.bf16.mxu0 0
  %1549 = vmatpush1.bf16.msra.mxu0 0
  %1550 = vmatprep.subr.bf16.mxu0 0
  %1551 = vmatpush1.bf16.msra.mxu0 0
  %1552 = vmatprep.subr.bf16.mxu0 0
  %1553 = vmatpush1.bf16.msra.mxu0 0
  %1554 = vmatprep.subr.bf16.mxu0 0
  %1555 = vmatpush1.bf16.msra.mxu0 0
  %1556 = vmatprep.subr.bf16.mxu0 0
  %1557 = vmatpush1.bf16.msra.mxu0 0
  %1558 = vmatprep.subr.bf16.mxu0 0
  %1559 = vmatpush1.bf16.msra.mxu0 0
  %1560 = vmatprep.mubr.bf16.mxu0 0
  %1561 = vmatmul.mubr.bf16.gmra.mrb[0].mxu0 %v1523
  %v1562 = vpop.f32.mrb[0].mxu0
  %v1563 = vadd.f32 0.0, %v1562
  %v1564 = vpop.f32.mrb[0].mxu0
  %v1565 = vpop.f32.mrb[0].mxu0
  %v1566 = vadd.f32 0.0, %v1565
  %v1567 = vpop.f32.mrb[0].mxu0
  %1568 = vdwg.mxu0
  %v1570 = vsel %vm122, %v1518, 0
  %v1573 = vsel %vm126, %v1519, 0
  %1575 = vmatprep.subr.bf16.mxu0 0
  %1576 = vmatpush1.bf16.msra.mxu0 %v1573
  %1577 = vmatprep.subr.bf16.mxu0 0
  %1578 = vmatpush1.bf16.msra.mxu0 0
  %1579 = vmatprep.subr.bf16.mxu0 0
  %1580 = vmatpush1.bf16.msra.mxu0 0
  %1581 = vmatprep.subr.bf16.mxu0 0
  %1582 = vmatpush1.bf16.msra.mxu0 0
  %1583 = vmatprep.subr.bf16.mxu0 0
  %1584 = vmatpush1.bf16.msra.mxu0 0
  %1585 = vmatprep.subr.bf16.mxu0 0
  %1586 = vmatpush1.bf16.msra.mxu0 0
  %1587 = vmatprep.subr.bf16.mxu0 0
  %1588 = vmatpush1.bf16.msra.mxu0 0
  %1589 = vmatprep.subr.bf16.mxu0 0
  %1590 = vmatpush1.bf16.msra.mxu0 0
  %1591 = vmatprep.subr.bf16.mxu0 0
  %1592 = vmatpush1.bf16.msra.mxu0 0
  %1593 = vmatprep.subr.bf16.mxu0 0
  %1594 = vmatpush1.bf16.msra.mxu0 0
  %1595 = vmatprep.subr.bf16.mxu0 0
  %1596 = vmatpush1.bf16.msra.mxu0 0
  %1597 = vmatprep.subr.bf16.mxu0 0
  %1598 = vmatpush1.bf16.msra.mxu0 0
  %1599 = vmatprep.subr.bf16.mxu0 0
  %1600 = vmatpush1.bf16.msra.mxu0 0
  %1601 = vmatprep.subr.bf16.mxu0 0
  %1602 = vmatpush1.bf16.msra.mxu0 0
  %1603 = vmatprep.subr.bf16.mxu0 0
  %1604 = vmatpush1.bf16.msra.mxu0 0
  %1605 = vmatprep.subr.bf16.mxu0 0
  %1606 = vmatpush1.bf16.msra.mxu0 0
  %1607 = vmatprep.mubr.bf16.mxu0 0
  %1608 = vmatmul.mubr.bf16.gmra.mrb[0].mxu0 %v1570
  %v1609 = vpop.f32.mrb[0].mxu0
  %v1610 = vadd.f32 %v1563, %v1609
  %v1611 = vpop.f32.mrb[0].mxu0
  %v1612 = vpop.f32.mrb[0].mxu0
  %v1613 = vadd.f32 %v1566, %v1612
  %v1614 = vpop.f32.mrb[0].mxu0
  %1615 = vdwg.mxu0
  %v1617 = vlaneseq
  %v1618 = vshrl.u32 %v1617, 7
  %v1619 = vsub.s32 0, %v1618
  %v1620 = vrot.slane %v119, %v1619
  %v1622 = vadd.f32 %v1610, %v1620
  %v1623 = vadd.f32 %v1613, %v1620
  %vm1624 = vcmask 31744
  %v1625 = vsel %vm1624, %v1622, -inf
  %1626 = vmax.xlane.f32.xlu0 %v1625
  %v1627 = vpop.xlane.xlu0 %1626
  %v1628 = vsel %vm1624, %v1623, -inf
  %1629 = vmax.xlane.f32.xlu0 %v1628
  %v1630 = vpop.xlane.xlu0 %1629
  %v1631 = vsub.f32 %v1622, %v1627
  %v1632 = vsub.f32 %v1623, %v1630
  %v1633 = vmul.f32 %v1631, 1.442695
  %v1634 = vpow.pop %v1633
  %v1635 = vmul.f32 %v1632, 1.442695
  %v1636 = vpow.pop %v1635
  %v1637 = vsel %vm1624, %v1634, 0.0
  %1638 = vadd.xlane.f32.xlu0 %v1637
  %v1639 = vpop.xlane.xlu0 %1638
  %v1640 = vsel %vm1624, %v1636, 0.0
  %1641 = vadd.xlane.f32.xlu0 %v1640
  %v1642 = vpop.xlane.xlu0 %1641
  %v1643 = vrcp.pop %v1639
  %v1644 = vmul.f32 %v1634, %v1643
  %v1645 = vrcp.pop %v1642
  %v1646 = vmul.f32 %v1636, %v1645
  %1647 = vst.msk [vmem:[%s26] sm:$0xff] %vm1624, %v1644
  %1648 = vst.msk [vmem:[%s26 + $0x8] sm:$0xff] %vm1624, %v1646
  %1649 = vst.msk [vmem:[%s27] sm:$0xff] %vm122, %v1347
  %1650 = vst.msk [vmem:[%s27 + $0x8] sm:$0xff] %vm122, %v1348
  %1651 = vst.msk [vmem:[%s28] sm:$0xff] %vm122, %v1516
  %1652 = vst.msk [vmem:[%s28 + $0x8] sm:$0xff] %vm122, %v1517
  // Predicated region
  $region106: #{nenn_forward.1} parent=0 // pred_check
    _
  $region107: #{nenn_forward.1} parent=0 // pred_check_branch
    %1654 = sbr.rel (0) target = $region109
  $region108: #{nenn_forward.1} parent=0 // pred_region
    _
  $region109: #{nenn_forward.1} parent=0 // pred_fallthru
    _
  // Predicated region
  $region110: #{nenn_forward.1} parent=0 // pred_check
    _
  $region111: #{nenn_forward.1} parent=0 // pred_check_branch
    %1656 = sbr.rel (0) target = $region113
  $region112: #{nenn_forward.1} parent=0 // pred_region
    _
  $region113: #{nenn_forward.1} parent=0 // pred_fallthru
    _
  // Predicated region
  $region114: #{nenn_forward.1} parent=0 // pred_check
    _
  $region115: #{nenn_forward.1} parent=0 // pred_check_branch
    %1658 = sbr.rel (0) target = $region117
  $region116: #{nenn_forward.1} parent=0 // pred_region
    _
  $region117: #{nenn_forward.1} parent=0 // pred_fallthru
    _
  // Predicated region
  $region118: #{nenn_forward.1} parent=0 // pred_check
    _
  $region119: #{nenn_forward.1} parent=0 // pred_check_branch
    %1660 = sbr.rel (0) target = $region121
  $region120: #{nenn_forward.1} parent=0 // pred_region
    _
  $region121: #{nenn_forward.1} parent=0 // pred_fallthru
    _
  // Predicated region
  $region122: #{nenn_forward.1} parent=0 // pred_check
    _
  $region123: #{nenn_forward.1} parent=0 // pred_check_branch
    %1662 = sbr.rel (0) target = $region125
  $region124: #{nenn_forward.1} parent=0 // pred_region
    _
  $region125: #{nenn_forward.1} parent=0 // pred_fallthru
    _
  // Predicated region
  $region126: #{nenn_forward.1} parent=0 // pred_check
    _
  $region127: #{nenn_forward.1} parent=0 // pred_check_branch
    %1664 = sbr.rel (0) target = $region129
  $region128: #{nenn_forward.1} parent=0 // pred_region
    _
  $region129: #{nenn_forward.1} parent=0 // pred_fallthru
    _

</llo_original>
